<compile_context>
chip_gen: v7x
topology: tpu7x:2x2x1
jax: 0.10.0
libtpu: 0.0.40
codegen_flags: <defaults>
</compile_context>

<pallas_src>
import functools

import jax
import jax.numpy as jnp
import numpy as np
from jax.experimental import pallas as pl
from jax.experimental.pallas import tpu as pltpu


# ----------------------------------------------------------------------------
# Pallas kernel: the entire BasicBlock for one batch element
# ----------------------------------------------------------------------------
def _basic_block_kernel(x_ref, s_ref, r_ref, m1_ref, m2_ref, md_ref,
                        b1_ref, b2_ref, o_ref):
    # x_ref : (H+2, (W+2)*Cin)  one zero-padded NHWC image, W/C flattened into lanes
    # o_ref : (Ho,  Wo*Cpad)    lane-dense output slab (Wo*Cpad % 128 == 0)
    f32 = jnp.float32
    x = x_ref[...]

    # stride-2 row gather of the padded input (rows 2i+kh), done on the MXU.
    t0 = jnp.dot(s_ref[0], x, preferred_element_type=f32)
    t1 = jnp.dot(s_ref[1], x, preferred_element_type=f32)   # also feeds the 1x1 downsample
    t2 = jnp.dot(s_ref[2], x, preferred_element_type=f32)

    # conv1 (3x3 / stride 2) + folded BN + ReLU, kept entirely on-chip.
    y1 = jnp.dot(t0, m1_ref[0], preferred_element_type=f32)
    y1 = y1 + jnp.dot(t1, m1_ref[1], preferred_element_type=f32)
    y1 = y1 + jnp.dot(t2, m1_ref[2], preferred_element_type=f32)
    y1 = jnp.maximum(y1 + b1_ref[...], 0.0)                 # (Ho, Wo*Cout)

    # downsample (1x1 / stride 2) + conv2 (3x3 / stride 1), f32 accumulation.
    acc = jnp.dot(t1, md_ref[...], preferred_element_type=f32)    # (Ho, Wo*Cpad)
    for kh in range(3):                                           # static unroll
        inner = jnp.dot(y1, m2_ref[kh], preferred_element_type=f32)
        acc = acc + jnp.dot(r_ref[kh], inner, preferred_element_type=f32)

    # residual already folded into acc; fused bias + final ReLU, lane-dense store.
    o_ref[...] = jnp.maximum(acc + b2_ref[...], 0.0).astype(o_ref.dtype)


# ----------------------------------------------------------------------------
# BasicBlock forward (Res=1, downsample=1, islast=False), NCHW in / NCHW out
# ----------------------------------------------------------------------------
@functools.partial(jax.jit, static_argnames=("stride",))
def basic_block_forward(x_nchw, kp, *, stride=2):
    n, cin, h, w = x_nchw.shape
    ho = (h + 2 - 3) // stride + 1
    wo = (w + 2 - 3) // stride + 1
    cout = kp["b1t"].shape[-1] // wo
    cpad = kp["b2dt"].shape[-1] // wo

    # Only glue around the single kernel: layout transpose, zero-pad, flatten.
    x = jnp.transpose(x_nchw, (0, 2, 3, 1))                        # NCHW -> NHWC
    x = jnp.pad(x, ((0, 0), (1, 1), (1, 1), (0, 0)))
    x = x.reshape(n, h + 2, (w + 2) * cin)

    flops = 2 * n * (3 * ho * (h + 2) * (w + 2) * cin
                     + 3 * ho * (w + 2) * cin * wo * cout
                     + ho * (w + 2) * cin * wo * cpad
                     + 3 * (ho * wo * cout * wo * cpad + ho * ho * wo * cpad))
    bytes_accessed = 4 * (x.size + n * ho * wo * cpad +
                          sum(kp[k].size for k in
                              ("s", "r", "m1", "m2", "md", "b1t", "b2dt")))

    out = pl.pallas_call(
        _basic_block_kernel,
        out_shape=jax.ShapeDtypeStruct((n, ho, wo * cpad), jnp.float32),
        grid=(n,),
        in_specs=[
            pl.BlockSpec((None, h + 2, (w + 2) * cin), lambda b: (b, 0, 0)),
            pl.BlockSpec(kp["s"].shape, lambda b: (0, 0, 0)),
            pl.BlockSpec(kp["r"].shape, lambda b: (0, 0, 0)),
            pl.BlockSpec(kp["m1"].shape, lambda b: (0, 0, 0)),
            pl.BlockSpec(kp["m2"].shape, lambda b: (0, 0, 0)),
            pl.BlockSpec(kp["md"].shape, lambda b: (0, 0)),
            pl.BlockSpec(kp["b1t"].shape, lambda b: (0, 0)),
            pl.BlockSpec(kp["b2dt"].shape, lambda b: (0, 0)),
        ],
        out_specs=pl.BlockSpec((None, ho, wo * cpad), lambda b: (b, 0, 0)),
        compiler_params=pltpu.CompilerParams(
            dimension_semantics=("parallel",)),
        cost_estimate=pl.CostEstimate(flops=flops, transcendentals=0,
                                      bytes_accessed=bytes_accessed),
    )(x, kp["s"], kp["r"], kp["m1"], kp["m2"], kp["md"], kp["b1t"], kp["b2dt"])

    out = out.reshape(n, ho, wo, cpad)[..., :cout]                 # drop pad channels
    return jnp.transpose(out, (0, 3, 1, 2))                        # NHWC -> NCHW


# ----------------------------------------------------------------------------
# Parameters: raw (conv weights + folded-BN scale/bias) and kernel-ready form
# ----------------------------------------------------------------------------
def _fold_bn(gamma, beta, mean, var, eps=1e-5):
    scale = gamma / jnp.sqrt(var + eps)
    bias = beta - mean * scale
    return scale, bias


def make_params(key, inplanes, out_planes):
    ks = jax.random.split(key, 15)

    def bn(i):
        gamma = 1.0 + 0.1 * jax.random.normal(ks[i], (out_planes,), jnp.float32)
        beta = 0.1 * jax.random.normal(ks[i + 1], (out_planes,), jnp.float32)
        mean = 0.05 * jax.random.normal(ks[i + 2], (out_planes,), jnp.float32)
        var = 1.0 + 0.1 * jnp.abs(jax.random.normal(ks[i + 3], (out_planes,), jnp.float32))
        return _fold_bn(gamma, beta, mean, var)

    w1 = 0.1 * jax.random.normal(ks[0], (3, 3, inplanes, out_planes), jnp.float32)
    w2 = 0.1 * jax.random.normal(ks[1], (3, 3, out_planes, out_planes), jnp.float32)
    wd = 0.1 * jax.random.normal(ks[2], (1, 1, inplanes, out_planes), jnp.float32)
    s1, b1 = bn(3)
    s2, b2 = bn(7)
    sd, bd = bn(11)
    return dict(w1=w1, w2=w2, wd=wd, s1=s1, b1=b1, s2=s2, b2=b2, sd=sd, bd=bd)


def prepare_kernel_params(p, h, w, stride=2):
    """One-time host-side precompute: fold BN into the conv weights and encode
    the 3x3/stride conv1, 3x3/stride-1 conv2 and 1x1/stride downsample as small
    structured matmul operands so the whole block runs as one Pallas kernel."""
    w1 = np.asarray(p["w1"], np.float32)           # (3,3,Cin,Cout)  HWIO
    w2 = np.asarray(p["w2"], np.float32)           # (3,3,Cout,Cout)
    wd = np.asarray(p["wd"], np.float32)           # (1,1,Cin,Cout)
    s1, b1 = np.asarray(p["s1"], np.float32), np.asarray(p["b1"], np.float32)
    s2, b2 = np.asarray(p["s2"], np.float32), np.asarray(p["b2"], np.float32)
    sd, bd = np.asarray(p["sd"], np.float32), np.asarray(p["bd"], np.float32)

    cin, cout = w1.shape[2], w1.shape[3]
    hp, wp = h + 2, w + 2
    ho = (h + 2 - 3) // stride + 1
    wo = (w + 2 - 3) // stride + 1

    # Fold BN (inference, running stats) scale into the conv weights.
    w1f, w2f, wdf = w1 * s1, w2 * s2, (wd * sd)[0, 0]

    # Pad output channels so Wo*Cpad is a multiple of 128 (lane-dense stores).
    cpad = cout
    while (wo * cpad) % 128 != 0:
        cpad += 1

    # S[kh]: stride-`stride` row gather of the padded input, as a matmul.
    s_sel = np.zeros((3, ho, hp), np.float32)
    for kh in range(3):
        for i in range(ho):
            s_sel[kh, i, stride * i + kh] = 1.0

    # R[kh]: conv2 output row i <- y1 row (i + kh - 1), zero outside the image.
    r_sel = np.zeros((3, ho, ho), np.float32)
    for kh in range(3):
        for i in range(ho):
            r = i + kh - 1
            if 0 <= r < ho:
                r_sel[kh, i, r] = 1.0

    # M1[kh]: conv1 kw/channel contraction for input-row phase kh.
    m1 = np.zeros((3, wp * cin, wo * cout), np.float32)
    for kh in range(3):
        for j in range(wo):
            for kw in range(3):
                col = stride * j + kw
                m1[kh, col * cin:(col + 1) * cin, j * cout:(j + 1) * cout] = w1f[kh, kw]

    # M2[kh]: conv2 kw/channel contraction for row offset kh (Cpad-padded cols).
    m2 = np.zeros((3, wo * cout, wo * cpad), np.float32)
    for kh in range(3):
        for j in range(wo):
            for kw in range(3):
                a = j + kw - 1
                if 0 <= a < wo:
                    m2[kh, a * cout:(a + 1) * cout, j * cpad:j * cpad + cout] = w2f[kh, kw]

    # Md: 1x1 stride-`stride` downsample (uses the row-phase-1 gather t1).
    md = np.zeros((wp * cin, wo * cpad), np.float32)
    for j in range(wo):
        col = stride * j + 1
        md[col * cin:(col + 1) * cin, j * cpad:j * cpad + cout] = wdf

    # Biases, tiled into the flattened (Wo*C) lane layout.
    b1t = np.tile(b1, wo).reshape(1, wo * cout)
    b2v = np.zeros((cpad,), np.float32)
    b2v[:cout] = b2 + bd
    b2dt = np.tile(b2v, wo).reshape(1, wo * cpad)

    return dict(s=jnp.asarray(s_sel), r=jnp.asarray(r_sel),
                m1=jnp.asarray(m1), m2=jnp.asarray(m2), md=jnp.asarray(md),
                b1t=jnp.asarray(b1t), b2dt=jnp.asarray(b2dt))


# ----------------------------------------------------------------------------
# Pure-JAX reference (lax.conv) for the correctness check
# ----------------------------------------------------------------------------
def _ref_conv_bn(x_nhwc, w_hwio, scale, bias, stride, padding, relu, residual=None):
    y = jax.lax.conv_general_dilated(
        x_nhwc, w_hwio, window_strides=(stride, stride),
        padding=((padding, padding), (padding, padding)),
        dimension_numbers=("NHWC", "HWIO", "NHWC"))
    y = y * scale[None, None, None, :] + bias[None, None, None, :]
    if residual is not None:
        y = y + residual
    if relu:
        y = jnp.maximum(y, 0.0)
    return y


def reference_forward(x_nchw, p, stride=2):
    x = jnp.transpose(x_nchw, (0, 2, 3, 1))
    o = _ref_conv_bn(x, p["w1"], p["s1"], p["b1"], stride, 1, True)
    r = _ref_conv_bn(x, p["wd"], p["sd"], p["bd"], stride, 0, False)
    o = _ref_conv_bn(o, p["w2"], p["s2"], p["b2"], 1, 1, True, residual=r)
    return jnp.transpose(o, (0, 3, 1, 2))


if __name__ == "__main__":
    key = jax.random.PRNGKey(0)
    kx, kparam = jax.random.split(key)

    inplanes, out_planes = 4, 8
    N, H, W = 2, 16, 16
    x = jax.random.normal(kx, (N, inplanes, H, W), jnp.float32)       # NCHW
    params = make_params(kparam, inplanes, out_planes)
    kparams = prepare_kernel_params(params, H, W, stride=2)

    out = jax.block_until_ready(basic_block_forward(x, kparams, stride=2))
    ref = jax.block_until_ready(reference_forward(x, params, stride=2))

    assert out.shape == (N, out_planes, H // 2, W // 2), out.shape
    assert np.allclose(np.asarray(out), np.asarray(ref), atol=1e-4, rtol=1e-4)

    print("KERNEL_OK")
</pallas_src>

<mosaic_0001>
module attributes {stable_mosaic.version = 11 : i64} {
  func.func @_basic_block_kernel(%arg0: i32, %arg1: memref<1x18x72xf32, #tpu.memory_space<vmem>>, %arg2: memref<3x8x18xf32, #tpu.memory_space<vmem>>, %arg3: memref<3x8x8xf32, #tpu.memory_space<vmem>>, %arg4: memref<3x72x64xf32, #tpu.memory_space<vmem>>, %arg5: memref<3x64x128xf32, #tpu.memory_space<vmem>>, %arg6: memref<72x128xf32, #tpu.memory_space<vmem>>, %arg7: memref<1x64xf32, #tpu.memory_space<vmem>>, %arg8: memref<1x128xf32, #tpu.memory_space<vmem>>, %arg9: memref<1x8x128xf32, #tpu.memory_space<vmem>>) attributes {dimension_semantics = [#tpu.dimension_semantics<parallel>], iteration_bounds = array<i64: 2>, scalar_prefetch = 0 : i64, scratch_operands = 0 : i64, tpu.core_type = #tpu.core_type<tc>, window_params = [{transform_indices = @transform_0, window_bounds = array<i64: 1, 18, 72>}, {pipeline_mode = #tpu.pipeline_mode<synchronous>, transform_indices = @transform_1, window_bounds = array<i64: 3, 8, 18>}, {pipeline_mode = #tpu.pipeline_mode<synchronous>, transform_indices = @transform_2, window_bounds = array<i64: 3, 8, 8>}, {pipeline_mode = #tpu.pipeline_mode<synchronous>, transform_indices = @transform_3, window_bounds = array<i64: 3, 72, 64>}, {pipeline_mode = #tpu.pipeline_mode<synchronous>, transform_indices = @transform_4, window_bounds = array<i64: 3, 64, 128>}, {pipeline_mode = #tpu.pipeline_mode<synchronous>, transform_indices = @transform_5, window_bounds = array<i64: 72, 128>}, {pipeline_mode = #tpu.pipeline_mode<synchronous>, transform_indices = @transform_6, window_bounds = array<i64: 1, 64>}, {pipeline_mode = #tpu.pipeline_mode<synchronous>, transform_indices = @transform_7, window_bounds = array<i64: 1, 128>}, {transform_indices = @transform_8, window_bounds = array<i64: 1, 8, 128>}]} {
    %c0 = arith.constant 0 : index
    %c0_0 = arith.constant 0 : index
    %c0_1 = arith.constant 0 : index
    %0 = vector.load %arg1[%c0, %c0_0, %c0_1] : memref<1x18x72xf32, #tpu.memory_space<vmem>>, vector<1x18x72xf32>
    %1 = vector.shape_cast %0 : vector<1x18x72xf32> to vector<18x72xf32>
    %c0_2 = arith.constant 0 : index
    %c0_3 = arith.constant 0 : index
    %c0_4 = arith.constant 0 : index
    %2 = vector.load %arg2[%c0_2, %c0_3, %c0_4] : memref<3x8x18xf32, #tpu.memory_space<vmem>>, vector<1x8x18xf32>
    %3 = vector.shape_cast %2 : vector<1x8x18xf32> to vector<8x18xf32>
    %cst = arith.constant dense<0.000000e+00> : vector<8x72xf32>
    %4 = tpu.matmul %3, %1, %cst {dimension_numbers = #tpu.dot_dimension_numbers<[1], [0], [0], [1], [0, 0, 1, 1], [], []>} : vector<8x18xf32>, vector<18x72xf32>, vector<8x72xf32> -> vector<8x72xf32>
    %c1 = arith.constant 1 : index
    %c0_5 = arith.constant 0 : index
    %c0_6 = arith.constant 0 : index
    %5 = vector.load %arg2[%c1, %c0_5, %c0_6] : memref<3x8x18xf32, #tpu.memory_space<vmem>>, vector<1x8x18xf32>
    %6 = vector.shape_cast %5 : vector<1x8x18xf32> to vector<8x18xf32>
    %cst_7 = arith.constant dense<0.000000e+00> : vector<8x72xf32>
    %7 = tpu.matmul %6, %1, %cst_7 {dimension_numbers = #tpu.dot_dimension_numbers<[1], [0], [0], [1], [0, 0, 1, 1], [], []>} : vector<8x18xf32>, vector<18x72xf32>, vector<8x72xf32> -> vector<8x72xf32>
    %c2 = arith.constant 2 : index
    %c0_8 = arith.constant 0 : index
    %c0_9 = arith.constant 0 : index
    %8 = vector.load %arg2[%c2, %c0_8, %c0_9] : memref<3x8x18xf32, #tpu.memory_space<vmem>>, vector<1x8x18xf32>
    %9 = vector.shape_cast %8 : vector<1x8x18xf32> to vector<8x18xf32>
    %cst_10 = arith.constant dense<0.000000e+00> : vector<8x72xf32>
    %10 = tpu.matmul %9, %1, %cst_10 {dimension_numbers = #tpu.dot_dimension_numbers<[1], [0], [0], [1], [0, 0, 1, 1], [], []>} : vector<8x18xf32>, vector<18x72xf32>, vector<8x72xf32> -> vector<8x72xf32>
    %c0_11 = arith.constant 0 : index
    %c0_12 = arith.constant 0 : index
    %c0_13 = arith.constant 0 : index
    %11 = vector.load %arg4[%c0_11, %c0_12, %c0_13] : memref<3x72x64xf32, #tpu.memory_space<vmem>>, vector<1x72x64xf32>
    %12 = vector.shape_cast %11 : vector<1x72x64xf32> to vector<72x64xf32>
    %cst_14 = arith.constant dense<0.000000e+00> : vector<8x64xf32>
    %13 = tpu.matmul %4, %12, %cst_14 {dimension_numbers = #tpu.dot_dimension_numbers<[1], [0], [0], [1], [0, 0, 1, 1], [], []>} : vector<8x72xf32>, vector<72x64xf32>, vector<8x64xf32> -> vector<8x64xf32>
    %c1_15 = arith.constant 1 : index
    %c0_16 = arith.constant 0 : index
    %c0_17 = arith.constant 0 : index
    %14 = vector.load %arg4[%c1_15, %c0_16, %c0_17] : memref<3x72x64xf32, #tpu.memory_space<vmem>>, vector<1x72x64xf32>
    %15 = vector.shape_cast %14 : vector<1x72x64xf32> to vector<72x64xf32>
    %cst_18 = arith.constant dense<0.000000e+00> : vector<8x64xf32>
    %16 = tpu.matmul %7, %15, %cst_18 {dimension_numbers = #tpu.dot_dimension_numbers<[1], [0], [0], [1], [0, 0, 1, 1], [], []>} : vector<8x72xf32>, vector<72x64xf32>, vector<8x64xf32> -> vector<8x64xf32>
    %17 = arith.addf %13, %16 : vector<8x64xf32>
    %c2_19 = arith.constant 2 : index
    %c0_20 = arith.constant 0 : index
    %c0_21 = arith.constant 0 : index
    %18 = vector.load %arg4[%c2_19, %c0_20, %c0_21] : memref<3x72x64xf32, #tpu.memory_space<vmem>>, vector<1x72x64xf32>
    %19 = vector.shape_cast %18 : vector<1x72x64xf32> to vector<72x64xf32>
    %cst_22 = arith.constant dense<0.000000e+00> : vector<8x64xf32>
    %20 = tpu.matmul %10, %19, %cst_22 {dimension_numbers = #tpu.dot_dimension_numbers<[1], [0], [0], [1], [0, 0, 1, 1], [], []>} : vector<8x72xf32>, vector<72x64xf32>, vector<8x64xf32> -> vector<8x64xf32>
    %21 = arith.addf %17, %20 : vector<8x64xf32>
    %c0_23 = arith.constant 0 : index
    %c0_24 = arith.constant 0 : index
    %22 = vector.load %arg7[%c0_23, %c0_24] : memref<1x64xf32, #tpu.memory_space<vmem>>, vector<1x64xf32>
    %23 = vector.broadcast %22 : vector<1x64xf32> to vector<8x64xf32>
    %24 = arith.addf %21, %23 : vector<8x64xf32>
    %cst_25 = arith.constant 0.000000e+00 : f32
    %25 = vector.broadcast %cst_25 : f32 to vector<8x64xf32>
    %26 = arith.maximumf %24, %25 : vector<8x64xf32>
    %c0_26 = arith.constant 0 : index
    %c0_27 = arith.constant 0 : index
    %27 = vector.load %arg6[%c0_26, %c0_27] : memref<72x128xf32, #tpu.memory_space<vmem>>, vector<72x128xf32>
    %cst_28 = arith.constant dense<0.000000e+00> : vector<8x128xf32>
    %28 = tpu.matmul %7, %27, %cst_28 {dimension_numbers = #tpu.dot_dimension_numbers<[1], [0], [0], [1], [0, 0, 1, 1], [], []>} : vector<8x72xf32>, vector<72x128xf32>, vector<8x128xf32> -> vector<8x128xf32>
    %c0_29 = arith.constant 0 : index
    %c0_30 = arith.constant 0 : index
    %c0_31 = arith.constant 0 : index
    %29 = vector.load %arg5[%c0_29, %c0_30, %c0_31] : memref<3x64x128xf32, #tpu.memory_space<vmem>>, vector<1x64x128xf32>
    %30 = vector.shape_cast %29 : vector<1x64x128xf32> to vector<64x128xf32>
    %cst_32 = arith.constant dense<0.000000e+00> : vector<8x128xf32>
    %31 = tpu.matmul %26, %30, %cst_32 {dimension_numbers = #tpu.dot_dimension_numbers<[1], [0], [0], [1], [0, 0, 1, 1], [], []>} : vector<8x64xf32>, vector<64x128xf32>, vector<8x128xf32> -> vector<8x128xf32>
    %c0_33 = arith.constant 0 : index
    %c0_34 = arith.constant 0 : index
    %c0_35 = arith.constant 0 : index
    %32 = vector.load %arg3[%c0_33, %c0_34, %c0_35] : memref<3x8x8xf32, #tpu.memory_space<vmem>>, vector<1x8x8xf32>
    %33 = vector.shape_cast %32 : vector<1x8x8xf32> to vector<8x8xf32>
    %cst_36 = arith.constant dense<0.000000e+00> : vector<8x128xf32>
    %34 = tpu.matmul %33, %31, %cst_36 {dimension_numbers = #tpu.dot_dimension_numbers<[1], [0], [0], [1], [0, 0, 1, 1], [], []>} : vector<8x8xf32>, vector<8x128xf32>, vector<8x128xf32> -> vector<8x128xf32>
    %35 = arith.addf %28, %34 : vector<8x128xf32>
    %c1_37 = arith.constant 1 : index
    %c0_38 = arith.constant 0 : index
    %c0_39 = arith.constant 0 : index
    %36 = vector.load %arg5[%c1_37, %c0_38, %c0_39] : memref<3x64x128xf32, #tpu.memory_space<vmem>>, vector<1x64x128xf32>
    %37 = vector.shape_cast %36 : vector<1x64x128xf32> to vector<64x128xf32>
    %cst_40 = arith.constant dense<0.000000e+00> : vector<8x128xf32>
    %38 = tpu.matmul %26, %37, %cst_40 {dimension_numbers = #tpu.dot_dimension_numbers<[1], [0], [0], [1], [0, 0, 1, 1], [], []>} : vector<8x64xf32>, vector<64x128xf32>, vector<8x128xf32> -> vector<8x128xf32>
    %c1_41 = arith.constant 1 : index
    %c0_42 = arith.constant 0 : index
    %c0_43 = arith.constant 0 : index
    %39 = vector.load %arg3[%c1_41, %c0_42, %c0_43] : memref<3x8x8xf32, #tpu.memory_space<vmem>>, vector<1x8x8xf32>
    %40 = vector.shape_cast %39 : vector<1x8x8xf32> to vector<8x8xf32>
    %cst_44 = arith.constant dense<0.000000e+00> : vector<8x128xf32>
    %41 = tpu.matmul %40, %38, %cst_44 {dimension_numbers = #tpu.dot_dimension_numbers<[1], [0], [0], [1], [0, 0, 1, 1], [], []>} : vector<8x8xf32>, vector<8x128xf32>, vector<8x128xf32> -> vector<8x128xf32>
    %42 = arith.addf %35, %41 : vector<8x128xf32>
    %c2_45 = arith.constant 2 : index
    %c0_46 = arith.constant 0 : index
    %c0_47 = arith.constant 0 : index
    %43 = vector.load %arg5[%c2_45, %c0_46, %c0_47] : memref<3x64x128xf32, #tpu.memory_space<vmem>>, vector<1x64x128xf32>
    %44 = vector.shape_cast %43 : vector<1x64x128xf32> to vector<64x128xf32>
    %cst_48 = arith.constant dense<0.000000e+00> : vector<8x128xf32>
    %45 = tpu.matmul %26, %44, %cst_48 {dimension_numbers = #tpu.dot_dimension_numbers<[1], [0], [0], [1], [0, 0, 1, 1], [], []>} : vector<8x64xf32>, vector<64x128xf32>, vector<8x128xf32> -> vector<8x128xf32>
    %c2_49 = arith.constant 2 : index
    %c0_50 = arith.constant 0 : index
    %c0_51 = arith.constant 0 : index
    %46 = vector.load %arg3[%c2_49, %c0_50, %c0_51] : memref<3x8x8xf32, #tpu.memory_space<vmem>>, vector<1x8x8xf32>
    %47 = vector.shape_cast %46 : vector<1x8x8xf32> to vector<8x8xf32>
    %cst_52 = arith.constant dense<0.000000e+00> : vector<8x128xf32>
    %48 = tpu.matmul %47, %45, %cst_52 {dimension_numbers = #tpu.dot_dimension_numbers<[1], [0], [0], [1], [0, 0, 1, 1], [], []>} : vector<8x8xf32>, vector<8x128xf32>, vector<8x128xf32> -> vector<8x128xf32>
    %49 = arith.addf %42, %48 : vector<8x128xf32>
    %c0_53 = arith.constant 0 : index
    %c0_54 = arith.constant 0 : index
    %50 = vector.load %arg8[%c0_53, %c0_54] : memref<1x128xf32, #tpu.memory_space<vmem>>, vector<1x128xf32>
    %51 = vector.broadcast %50 : vector<1x128xf32> to vector<8x128xf32>
    %52 = arith.addf %49, %51 : vector<8x128xf32>
    %cst_55 = arith.constant 0.000000e+00 : f32
    %53 = vector.broadcast %cst_55 : f32 to vector<8x128xf32>
    %54 = arith.maximumf %52, %53 : vector<8x128xf32>
    %c0_56 = arith.constant 0 : index
    %c0_57 = arith.constant 0 : index
    %c0_58 = arith.constant 0 : index
    %55 = vector.load %arg9[%c0_56, %c0_57, %c0_58] : memref<1x8x128xf32, #tpu.memory_space<vmem>>, vector<1x8x128xf32>
    %56 = vector.shape_cast %55 : vector<1x8x128xf32> to vector<8x128xf32>
    %57 = vector.shape_cast %54 : vector<8x128xf32> to vector<1x8x128xf32>
    tpu.vector_store %arg9[%c0_56, %c0_57, %c0_58], %57 {strides = array<i32>} : memref<1x8x128xf32, #tpu.memory_space<vmem>>, vector<1x8x128xf32>,
    return
  }
  func.func @transform_0(%arg0: i32) -> (i32, i32, i32) {
    %c0_i32 = arith.constant 0 : i32
    %c0_i32_0 = arith.constant 0 : i32
    %c0_i32_1 = arith.constant 0 : i32
    return %arg0, %c0_i32, %c0_i32_0 : i32, i32, i32
  }
  func.func @transform_1(%arg0: i32) -> (i32, i32, i32) {
    %c0_i32 = arith.constant 0 : i32
    %c0_i32_0 = arith.constant 0 : i32
    %c0_i32_1 = arith.constant 0 : i32
    %c0_i32_2 = arith.constant 0 : i32
    return %c0_i32, %c0_i32_0, %c0_i32_1 : i32, i32, i32
  }
  func.func @transform_2(%arg0: i32) -> (i32, i32, i32) {
    %c0_i32 = arith.constant 0 : i32
    %c0_i32_0 = arith.constant 0 : i32
    %c0_i32_1 = arith.constant 0 : i32
    %c0_i32_2 = arith.constant 0 : i32
    return %c0_i32, %c0_i32_0, %c0_i32_1 : i32, i32, i32
  }
  func.func @transform_3(%arg0: i32) -> (i32, i32, i32) {
    %c0_i32 = arith.constant 0 : i32
    %c0_i32_0 = arith.constant 0 : i32
    %c0_i32_1 = arith.constant 0 : i32
    %c0_i32_2 = arith.constant 0 : i32
    return %c0_i32, %c0_i32_0, %c0_i32_1 : i32, i32, i32
  }
  func.func @transform_4(%arg0: i32) -> (i32, i32, i32) {
    %c0_i32 = arith.constant 0 : i32
    %c0_i32_0 = arith.constant 0 : i32
    %c0_i32_1 = arith.constant 0 : i32
    %c0_i32_2 = arith.constant 0 : i32
    return %c0_i32, %c0_i32_0, %c0_i32_1 : i32, i32, i32
  }
  func.func @transform_5(%arg0: i32) -> (i32, i32) {
    %c0_i32 = arith.constant 0 : i32
    %c0_i32_0 = arith.constant 0 : i32
    %c0_i32_1 = arith.constant 0 : i32
    return %c0_i32, %c0_i32_0 : i32, i32
  }
  func.func @transform_6(%arg0: i32) -> (i32, i32) {
    %c0_i32 = arith.constant 0 : i32
    %c0_i32_0 = arith.constant 0 : i32
    %c0_i32_1 = arith.constant 0 : i32
    return %c0_i32, %c0_i32_0 : i32, i32
  }
  func.func @transform_7(%arg0: i32) -> (i32, i32) {
    %c0_i32 = arith.constant 0 : i32
    %c0_i32_0 = arith.constant 0 : i32
    %c0_i32_1 = arith.constant 0 : i32
    return %c0_i32, %c0_i32_0 : i32, i32
  }
  func.func @transform_8(%arg0: i32) -> (i32, i32, i32) {
    %c0_i32 = arith.constant 0 : i32
    %c0_i32_0 = arith.constant 0 : i32
    %c0_i32_1 = arith.constant 0 : i32
    return %arg0, %c0_i32, %c0_i32_0 : i32, i32, i32
  }
}

</mosaic_0001>

<llo_original>
// kernel: basic_block_forward.1
$region0: #{basic_block_forward.1}
  #allocation0 [shape = 'u32[]', space=smem, size = 0x4, offset = 0x4, fixed_abs, tag = 'smem constant byte address 0x4 - core index']
  #allocation1 [shape = 'u32[144,128]{1,0:T(1,128)}', space=vmem, size = 0x12000, scoped, tag = 'internal scratch']
  %s0 = inlined_call_operand.vmem [shape: f32[2,18,72], index: 0, kind: input, shape index: {}]
  %s1 = inlined_call_operand.vmem [shape: f32[3,8,18], index: 1, kind: input, shape index: {}]
  %s2 = inlined_call_operand.vmem [shape: f32[3,8,8], index: 2, kind: input, shape index: {}]
  %s3 = inlined_call_operand.vmem [shape: f32[3,72,64], index: 3, kind: input, shape index: {}]
  %s4 = inlined_call_operand.vmem [shape: f32[3,64,128], index: 4, kind: input, shape index: {}]
  %s5 = inlined_call_operand.vmem [shape: f32[72,128], index: 5, kind: input, shape index: {}]
  %s6 = inlined_call_operand.vmem [shape: f32[1,64], index: 6, kind: input, shape index: {}]
  %s7 = inlined_call_operand.vmem [shape: f32[1,128], index: 7, kind: input, shape index: {}]
  %s8 = inlined_call_operand.vmem [shape: f32[2,8,128], index: 8, kind: output, shape index: {}]
  %s9 = sld [smem:[#allocation0]]
  $region65: #{basic_block_forward.1} parent=0
    _
  %s11 = ssub.s32 1, %s9
  %s12 = scalar_select 0, %s11, %s9
  loop: start=0, step=1, limit=4
  $region2: #{basic_block_forward.1} parent=0 // loop_pre_header
    _
  $region3: #{basic_block_forward.1} parent=0 // loop_header
    %s14 = sphi 0, %s18
    %p15 = scmp.ge.s32.totalorder %s14, 4
    %s24 = sphi 0, %s26
    %s27 = sphi 0, %s24
    %s28 = sphi 0, %s27
    %s44 = sphi 0, %s28
    %s48 = sphi 0, %s48
    %s50 = sphi 0, %s48
    %s51 = sphi 0, %s50
    %s65 = sphi 0, %s51
    %s69 = sphi 0, %s69
    %s71 = sphi 0, %s69
    %s72 = sphi 0, %s71
    %s86 = sphi 0, %s72
    %s90 = sphi 0, %s90
    %s92 = sphi 0, %s90
    %s93 = sphi 0, %s92
    %s107 = sphi 0, %s93
    %s111 = sphi 0, %s111
    %s113 = sphi 0, %s111
    %s114 = sphi 0, %s113
    %s128 = sphi 0, %s114
    %s132 = sphi 0, %s132
    %s134 = sphi 0, %s132
    %s135 = sphi 0, %s134
    %s149 = sphi 0, %s135
    %s153 = sphi 0, %s153
    %s155 = sphi 0, %s153
    %s156 = sphi 0, %s155
    %s170 = sphi 0, %s156
    %s174 = sphi 0, %s174
    %s176 = sphi 0, %s174
    %s177 = sphi 0, %s176
    %s191 = sphi 0, %s177
    %s197 = sphi 0, %s199
    %s200 = sphi 0, %s197
    %s201 = sphi 0, %s200
    %s217 = sphi 0, %s201
  $region4: #{basic_block_forward.1} parent=0 // loop_header_branch
    %17 = sbr.rel (%p15) target = $region8
  $region5: #{basic_block_forward.1} parent=0 // loop_body
    %s19 = ssub.s32 %s14, 1
    %s20 = ssub.s32 %s14, 2
    %s21 = sadd.s32 %s14, 1
    %s22 = ssub.s32 %s14, %s21
    %p23 = scmp.eq.s32.totalorder %s22, 0
    %s25 = sadd.s32 %s24, 1
    %s26 = scalar_select %p23, %s24, %s25
    %p29 = pneg %p23
    %p30 = scmp.eq.s32.totalorder %s14, 1
    %p31 = por %p29, %p30
    %p32 = scmp.ne.s32.totalorder %s24, %s27
    %p33 = scmp.eq.s32.totalorder %s14, 0
    %p34 = por %p32, %p33
    %p35 = scmp.ne.s32.totalorder %s24, %s27
    %p36 = scmp.eq.s32.totalorder %s19, 1
    %p37 = por %p35, %p36
    %p38 = scmp.ne.s32.totalorder %s27, %s28
    %p39 = scmp.eq.s32.totalorder %s19, 0
    %p40 = por %p38, %p39
    %p41 = scmp.ne.s32.totalorder %s27, %s28
    %p42 = scmp.eq.s32.totalorder %s20, 1
    %p43 = por %p41, %p42
    %p45 = scmp.ne.s32.totalorder %s28, %s44
    %p46 = scmp.eq.s32.totalorder %s20, 0
    %p47 = por %p45, %p46
    %s49 = sadd.s32 %s48, 1
    %p52 = scmp.eq.s32.totalorder %s14, 1
    %p53 = scmp.ne.s32.totalorder %s48, %s50
    %p54 = scmp.eq.s32.totalorder %s14, 0
    %p55 = por %p53, %p54
    %p56 = scmp.ne.s32.totalorder %s48, %s50
    %p57 = scmp.eq.s32.totalorder %s19, 1
    %p58 = por %p56, %p57
    %p59 = scmp.ne.s32.totalorder %s50, %s51
    %p60 = scmp.eq.s32.totalorder %s19, 0
    %p61 = por %p59, %p60
    %p62 = scmp.ne.s32.totalorder %s50, %s51
    %p63 = scmp.eq.s32.totalorder %s20, 1
    %p64 = por %p62, %p63
    %p66 = scmp.ne.s32.totalorder %s51, %s65
    %p67 = scmp.eq.s32.totalorder %s20, 0
    %p68 = por %p66, %p67
    %s70 = sadd.s32 %s69, 1
    %p73 = scmp.eq.s32.totalorder %s14, 1
    %p74 = scmp.ne.s32.totalorder %s69, %s71
    %p75 = scmp.eq.s32.totalorder %s14, 0
    %p76 = por %p74, %p75
    %p77 = scmp.ne.s32.totalorder %s69, %s71
    %p78 = scmp.eq.s32.totalorder %s19, 1
    %p79 = por %p77, %p78
    %p80 = scmp.ne.s32.totalorder %s71, %s72
    %p81 = scmp.eq.s32.totalorder %s19, 0
    %p82 = por %p80, %p81
    %p83 = scmp.ne.s32.totalorder %s71, %s72
    %p84 = scmp.eq.s32.totalorder %s20, 1
    %p85 = por %p83, %p84
    %p87 = scmp.ne.s32.totalorder %s72, %s86
    %p88 = scmp.eq.s32.totalorder %s20, 0
    %p89 = por %p87, %p88
    %s91 = sadd.s32 %s90, 1
    %p94 = scmp.eq.s32.totalorder %s14, 1
    %p95 = scmp.ne.s32.totalorder %s90, %s92
    %p96 = scmp.eq.s32.totalorder %s14, 0
    %p97 = por %p95, %p96
    %p98 = scmp.ne.s32.totalorder %s90, %s92
    %p99 = scmp.eq.s32.totalorder %s19, 1
    %p100 = por %p98, %p99
    %p101 = scmp.ne.s32.totalorder %s92, %s93
    %p102 = scmp.eq.s32.totalorder %s19, 0
    %p103 = por %p101, %p102
    %p104 = scmp.ne.s32.totalorder %s92, %s93
    %p105 = scmp.eq.s32.totalorder %s20, 1
    %p106 = por %p104, %p105
    %p108 = scmp.ne.s32.totalorder %s93, %s107
    %p109 = scmp.eq.s32.totalorder %s20, 0
    %p110 = por %p108, %p109
    %s112 = sadd.s32 %s111, 1
    %p115 = scmp.eq.s32.totalorder %s14, 1
    %p116 = scmp.ne.s32.totalorder %s111, %s113
    %p117 = scmp.eq.s32.totalorder %s14, 0
    %p118 = por %p116, %p117
    %p119 = scmp.ne.s32.totalorder %s111, %s113
    %p120 = scmp.eq.s32.totalorder %s19, 1
    %p121 = por %p119, %p120
    %p122 = scmp.ne.s32.totalorder %s113, %s114
    %p123 = scmp.eq.s32.totalorder %s19, 0
    %p124 = por %p122, %p123
    %p125 = scmp.ne.s32.totalorder %s113, %s114
    %p126 = scmp.eq.s32.totalorder %s20, 1
    %p127 = por %p125, %p126
    %p129 = scmp.ne.s32.totalorder %s114, %s128
    %p130 = scmp.eq.s32.totalorder %s20, 0
    %p131 = por %p129, %p130
    %s133 = sadd.s32 %s132, 1
    %p136 = scmp.eq.s32.totalorder %s14, 1
    %p137 = scmp.ne.s32.totalorder %s132, %s134
    %p138 = scmp.eq.s32.totalorder %s14, 0
    %p139 = por %p137, %p138
    %p140 = scmp.ne.s32.totalorder %s132, %s134
    %p141 = scmp.eq.s32.totalorder %s19, 1
    %p142 = por %p140, %p141
    %p143 = scmp.ne.s32.totalorder %s134, %s135
    %p144 = scmp.eq.s32.totalorder %s19, 0
    %p145 = por %p143, %p144
    %p146 = scmp.ne.s32.totalorder %s134, %s135
    %p147 = scmp.eq.s32.totalorder %s20, 1
    %p148 = por %p146, %p147
    %p150 = scmp.ne.s32.totalorder %s135, %s149
    %p151 = scmp.eq.s32.totalorder %s20, 0
    %p152 = por %p150, %p151
    %s154 = sadd.s32 %s153, 1
    %p157 = scmp.eq.s32.totalorder %s14, 1
    %p158 = scmp.ne.s32.totalorder %s153, %s155
    %p159 = scmp.eq.s32.totalorder %s14, 0
    %p160 = por %p158, %p159
    %p161 = scmp.ne.s32.totalorder %s153, %s155
    %p162 = scmp.eq.s32.totalorder %s19, 1
    %p163 = por %p161, %p162
    %p164 = scmp.ne.s32.totalorder %s155, %s156
    %p165 = scmp.eq.s32.totalorder %s19, 0
    %p166 = por %p164, %p165
    %p167 = scmp.ne.s32.totalorder %s155, %s156
    %p168 = scmp.eq.s32.totalorder %s20, 1
    %p169 = por %p167, %p168
    %p171 = scmp.ne.s32.totalorder %s156, %s170
    %p172 = scmp.eq.s32.totalorder %s20, 0
    %p173 = por %p171, %p172
    %s175 = sadd.s32 %s174, 1
    %p178 = scmp.eq.s32.totalorder %s14, 1
    %p179 = scmp.ne.s32.totalorder %s174, %s176
    %p180 = scmp.eq.s32.totalorder %s14, 0
    %p181 = por %p179, %p180
    %p182 = scmp.ne.s32.totalorder %s174, %s176
    %p183 = scmp.eq.s32.totalorder %s19, 1
    %p184 = por %p182, %p183
    %p185 = scmp.ne.s32.totalorder %s176, %s177
    %p186 = scmp.eq.s32.totalorder %s19, 0
    %p187 = por %p185, %p186
    %p188 = scmp.ne.s32.totalorder %s176, %s177
    %p189 = scmp.eq.s32.totalorder %s20, 1
    %p190 = por %p188, %p189
    %p192 = scmp.ne.s32.totalorder %s177, %s191
    %p193 = scmp.eq.s32.totalorder %s20, 0
    %p194 = por %p192, %p193
    %s195 = ssub.s32 %s14, %s21
    %p196 = scmp.eq.s32.totalorder %s195, 0
    %s198 = sadd.s32 %s197, 1
    %s199 = scalar_select %p196, %s197, %s198
    %p202 = pneg %p196
    %p203 = scmp.eq.s32.totalorder %s14, 1
    %p204 = por %p202, %p203
    %p205 = scmp.ne.s32.totalorder %s197, %s200
    %p206 = scmp.eq.s32.totalorder %s14, 0
    %p207 = por %p205, %p206
    %p208 = scmp.ne.s32.totalorder %s197, %s200
    %p209 = scmp.eq.s32.totalorder %s19, 1
    %p210 = por %p208, %p209
    %p211 = scmp.ne.s32.totalorder %s200, %s201
    %p212 = scmp.eq.s32.totalorder %s19, 0
    %p213 = por %p211, %p212
    %p214 = scmp.ne.s32.totalorder %s200, %s201
    %p215 = scmp.eq.s32.totalorder %s20, 1
    %p216 = por %p214, %p215
    %p218 = scmp.ne.s32.totalorder %s201, %s217
    %p219 = scmp.eq.s32.totalorder %s20, 0
    %p220 = por %p218, %p219
    %p221 = scmp.le.s32.totalorder 1, %s14
    %p222 = scmp.lt.s32.totalorder %s14, 3
    %p223 = pnand %p221, %p222
    %p224 = pneg %p223
    // Predicated region
    $region9: #{basic_block_forward.1} parent=5 // pred_check
      _
    $region10: #{basic_block_forward.1} parent=5 // pred_check_branch
      %226 = sbr.rel (%p223) target = $region12
    $region11: #{basic_block_forward.1} parent=5 // pred_region
      %s227 = ssub.s32 %s14, 1
      // Predicated region
      $region13: #{basic_block_forward.1} parent=11 // pred_check
        %p228 = pneg %p61
      $region14: #{basic_block_forward.1} parent=11 // pred_check_branch
        %230 = sbr.rel (%p228) target = $region16
      $region15: #{basic_block_forward.1} parent=11 // pred_region
        _
      $region16: #{basic_block_forward.1} parent=11 // pred_fallthru
        _
      // Predicated region
      $region17: #{basic_block_forward.1} parent=11 // pred_check
        %p231 = pneg %p82
      $region18: #{basic_block_forward.1} parent=11 // pred_check_branch
        %233 = sbr.rel (%p231) target = $region20
      $region19: #{basic_block_forward.1} parent=11 // pred_region
        _
      $region20: #{basic_block_forward.1} parent=11 // pred_fallthru
        _
      // Predicated region
      $region21: #{basic_block_forward.1} parent=11 // pred_check
        %p234 = pneg %p103
      $region22: #{basic_block_forward.1} parent=11 // pred_check_branch
        %236 = sbr.rel (%p234) target = $region24
      $region23: #{basic_block_forward.1} parent=11 // pred_region
        _
      $region24: #{basic_block_forward.1} parent=11 // pred_fallthru
        _
      // Predicated region
      $region25: #{basic_block_forward.1} parent=11 // pred_check
        %p237 = pneg %p124
      $region26: #{basic_block_forward.1} parent=11 // pred_check_branch
        %239 = sbr.rel (%p237) target = $region28
      $region27: #{basic_block_forward.1} parent=11 // pred_region
        _
      $region28: #{basic_block_forward.1} parent=11 // pred_fallthru
        _
      // Predicated region
      $region29: #{basic_block_forward.1} parent=11 // pred_check
        %p240 = pneg %p145
      $region30: #{basic_block_forward.1} parent=11 // pred_check_branch
        %242 = sbr.rel (%p240) target = $region32
      $region31: #{basic_block_forward.1} parent=11 // pred_region
        _
      $region32: #{basic_block_forward.1} parent=11 // pred_fallthru
        _
      // Predicated region
      $region33: #{basic_block_forward.1} parent=11 // pred_check
        %p243 = pneg %p166
      $region34: #{basic_block_forward.1} parent=11 // pred_check_branch
        %245 = sbr.rel (%p243) target = $region36
      $region35: #{basic_block_forward.1} parent=11 // pred_region
        _
      $region36: #{basic_block_forward.1} parent=11 // pred_fallthru
        _
      // Predicated region
      $region37: #{basic_block_forward.1} parent=11 // pred_check
        %p246 = pneg %p187
      $region38: #{basic_block_forward.1} parent=11 // pred_check_branch
        %248 = sbr.rel (%p246) target = $region40
      $region39: #{basic_block_forward.1} parent=11 // pred_region
        _
      $region40: #{basic_block_forward.1} parent=11 // pred_fallthru
        _
    $region12: #{basic_block_forward.1} parent=5 // pred_fallthru
      _
    %p249 = scmp.lt.s32.totalorder %s14, 2
    // Predicated region
    $region41: #{basic_block_forward.1} parent=5 // pred_check
      %p250 = pneg %p249
    $region42: #{basic_block_forward.1} parent=5 // pred_check_branch
      %252 = sbr.rel (%p250) target = $region44
    $region43: #{basic_block_forward.1} parent=5 // pred_region
      // Predicated region
      $region45: #{basic_block_forward.1} parent=43 // pred_check
        %p253 = pneg %p34
      $region46: #{basic_block_forward.1} parent=43 // pred_check_branch
        %255 = sbr.rel (%p253) target = $region48
      $region47: #{basic_block_forward.1} parent=43 // pred_region
        %p256 = scmp.lt.s32.totalorder %s14, 1
        %s257 = scalar_select %p256, %s14, 1
        %s258 = smul.addr %s257, 3
        %s259 = smul.addr %s258, 8
        %s260 = scalar_lea.vmem %s0, %s259
      $region48: #{basic_block_forward.1} parent=43 // pred_fallthru
        _
    $region44: #{basic_block_forward.1} parent=5 // pred_fallthru
      _
    %p261 = scmp.le.s32.totalorder 1, %s14
    %p262 = scmp.lt.s32.totalorder %s14, 3
    %p263 = pnand %p261, %p262
    %p264 = pneg %p263
    // Predicated region
    $region49: #{basic_block_forward.1} parent=5 // pred_check
      _
    $region50: #{basic_block_forward.1} parent=5 // pred_check_branch
      %266 = sbr.rel (%p263) target = $region52
    $region51: #{basic_block_forward.1} parent=5 // pred_region
      %s267 = ssub.s32 %s14, 1
      %p268 = scmp.lt.s32.totalorder %s19, 1
      %s269 = scalar_select %p268, %s19, 1
      %s270 = smul.addr %s269, 3
      %s271 = smul.addr %s270, 8
      %s272 = scalar_lea.vmem %s0, %s271
      %p273 = pneg %p40
      %p274 = pneg %p37
      %p275 = pneg %p61
      %p276 = pneg %p58
      %p277 = pneg %p82
      %p278 = pneg %p79
      %p279 = pneg %p103
      %p280 = pneg %p100
      %p281 = pneg %p124
      %p282 = pneg %p121
      %p283 = pneg %p145
      %p284 = pneg %p142
      %p285 = pneg %p166
      %p286 = pneg %p163
      %p287 = pneg %p187
      %p288 = pneg %p184
      %p289 = pneg %p213
      %p290 = pneg %p210
      %p291 = scmp.lt.s32.totalorder %s19, 1
      %s292 = scalar_select %p291, %s19, 1
      %s293 = smul.addr %s292, 8
      %s294 = scalar_lea.vmem %s8, %s293
      %p295 = scmp.lt.s32.totalorder %s19, 1
      %s296 = scalar_select %p295, %s19, 1
      %s297 = smul.addr %s296, 3
      %s298 = smul.addr %s297, 8
      %s299 = scalar_lea.vmem %s0, %s298
      %p300 = scmp.lt.s32.totalorder %s19, 1
      %s301 = scalar_select %p300, %s19, 1
      %s302 = smul.addr %s301, 8
      %s303 = scalar_lea.vmem %s8, %s302
      %v304 = vld [vmem:[%s299] sm:$0xff]
      %v305 = vld [vmem:[%s299 + $0x8] sm:$0xff]
      %v306 = vld [vmem:[%s299 + $0x10] sm:$0x3]
      %v307 = vld [vmem:[%s1] sm:$0xff]
      %vm308 = vcmask 146432
      %v310 = vsel %vm308, %v307, 0
      %vm312 = vcmask 1041408
      %v314 = vsel %vm312, %v306, 0
      %316 = vmatprep.subr.mxu0 0.0
      %317 = vmatpush1.msra.mxu0 %v304
      %318 = vmatprep.subr.mxu0 0.0
      %319 = vmatpush1.msra.mxu0 %v305
      %320 = vmatprep.subr.mxu0 0.0
      %321 = vmatpush1.msra.mxu0 %v314
      %322 = vmatprep.subr.mxu0 0.0
      %323 = vmatpush1.msra.mxu0 0.0
      %324 = vmatprep.subr.mxu0 0.0
      %325 = vmatpush1.msra.mxu0 0.0
      %326 = vmatprep.subr.mxu0 0.0
      %327 = vmatpush1.msra.mxu0 0.0
      %328 = vmatprep.subr.mxu0 0.0
      %329 = vmatpush1.msra.mxu0 0.0
      %330 = vmatprep.subr.mxu0 0.0
      %331 = vmatpush1.msra.mxu0 0.0
      %332 = vmatprep.subr.mxu0 0.0
      %333 = vmatpush1.msra.mxu0 0.0
      %334 = vmatprep.subr.mxu0 0.0
      %335 = vmatpush1.msra.mxu0 0.0
      %336 = vmatprep.subr.mxu0 0.0
      %337 = vmatpush1.msra.mxu0 0.0
      %338 = vmatprep.subr.mxu0 0.0
      %339 = vmatpush1.msra.mxu0 0.0
      %340 = vmatprep.subr.mxu0 0.0
      %341 = vmatpush1.msra.mxu0 0.0
      %342 = vmatprep.subr.mxu0 0.0
      %343 = vmatpush1.msra.mxu0 0.0
      %344 = vmatprep.subr.mxu0 0.0
      %345 = vmatpush1.msra.mxu0 0.0
      %346 = vmatprep.subr.mxu0 0.0
      %347 = vmatpush1.msra.mxu0 0.0
      %348 = vmatprep.subr.mxu0 0.0
      %349 = vmatpush1.msra.mxu0 0.0
      %350 = vmatprep.subr.mxu0 0.0
      %351 = vmatpush1.msra.mxu0 0.0
      %352 = vmatprep.subr.mxu0 0.0
      %353 = vmatpush1.msra.mxu0 0.0
      %354 = vmatprep.subr.mxu0 0.0
      %355 = vmatpush1.msra.mxu0 0.0
      %356 = vmatprep.subr.mxu0 0.0
      %357 = vmatpush1.msra.mxu0 0.0
      %358 = vmatprep.subr.mxu0 0.0
      %359 = vmatpush1.msra.mxu0 0.0
      %360 = vmatprep.subr.mxu0 0.0
      %361 = vmatpush1.msra.mxu0 0.0
      %362 = vmatprep.subr.mxu0 0.0
      %363 = vmatpush1.msra.mxu0 0.0
      %364 = vmatprep.subr.mxu0 0.0
      %365 = vmatpush1.msra.mxu0 0.0
      %366 = vmatprep.subr.mxu0 0.0
      %367 = vmatpush1.msra.mxu0 0.0
      %368 = vmatprep.subr.mxu0 0.0
      %369 = vmatpush1.msra.mxu0 0.0
      %370 = vmatprep.subr.mxu0 0.0
      %371 = vmatpush1.msra.mxu0 0.0
      %372 = vmatprep.subr.mxu0 0.0
      %373 = vmatpush1.msra.mxu0 0.0
      %374 = vmatprep.subr.mxu0 0.0
      %375 = vmatpush1.msra.mxu0 0.0
      %376 = vmatprep.subr.mxu0 0.0
      %377 = vmatpush1.msra.mxu0 0.0
      %378 = vmatprep.subr.mxu0 0.0
      %379 = vmatpush1.msra.mxu0 0.0
      %380 = vmatprep.mubr.f32.mxu0 0.0
      %381 = vmatmul.mubr.f32.gmra.mrb[0].mxu0 %v310
      %v382 = vpop.f32.mrb[0].mxu0
      %v383 = vadd.f32 0.0, %v382
      %v384 = vpop.f32.mrb[0].mxu0
      %385 = vdwg.mxu0
      %s386 = scalar_lea.vmem %s1, 8
      %v387 = vld [vmem:[%s386] sm:$0xff]
      %v389 = vsel %vm308, %v387, 0
      %391 = vmatprep.subr.mxu0 0.0
      %392 = vmatpush1.msra.mxu0 %v304
      %393 = vmatprep.subr.mxu0 0.0
      %394 = vmatpush1.msra.mxu0 %v305
      %395 = vmatprep.subr.mxu0 0.0
      %396 = vmatpush1.msra.mxu0 %v314
      %397 = vmatprep.subr.mxu0 0.0
      %398 = vmatpush1.msra.mxu0 0.0
      %399 = vmatprep.subr.mxu0 0.0
      %400 = vmatpush1.msra.mxu0 0.0
      %401 = vmatprep.subr.mxu0 0.0
      %402 = vmatpush1.msra.mxu0 0.0
      %403 = vmatprep.subr.mxu0 0.0
      %404 = vmatpush1.msra.mxu0 0.0
      %405 = vmatprep.subr.mxu0 0.0
      %406 = vmatpush1.msra.mxu0 0.0
      %407 = vmatprep.subr.mxu0 0.0
      %408 = vmatpush1.msra.mxu0 0.0
      %409 = vmatprep.subr.mxu0 0.0
      %410 = vmatpush1.msra.mxu0 0.0
      %411 = vmatprep.subr.mxu0 0.0
      %412 = vmatpush1.msra.mxu0 0.0
      %413 = vmatprep.subr.mxu0 0.0
      %414 = vmatpush1.msra.mxu0 0.0
      %415 = vmatprep.subr.mxu0 0.0
      %416 = vmatpush1.msra.mxu0 0.0
      %417 = vmatprep.subr.mxu0 0.0
      %418 = vmatpush1.msra.mxu0 0.0
      %419 = vmatprep.subr.mxu0 0.0
      %420 = vmatpush1.msra.mxu0 0.0
      %421 = vmatprep.subr.mxu0 0.0
      %422 = vmatpush1.msra.mxu0 0.0
      %423 = vmatprep.subr.mxu0 0.0
      %424 = vmatpush1.msra.mxu0 0.0
      %425 = vmatprep.subr.mxu0 0.0
      %426 = vmatpush1.msra.mxu0 0.0
      %427 = vmatprep.subr.mxu0 0.0
      %428 = vmatpush1.msra.mxu0 0.0
      %429 = vmatprep.subr.mxu0 0.0
      %430 = vmatpush1.msra.mxu0 0.0
      %431 = vmatprep.subr.mxu0 0.0
      %432 = vmatpush1.msra.mxu0 0.0
      %433 = vmatprep.subr.mxu0 0.0
      %434 = vmatpush1.msra.mxu0 0.0
      %435 = vmatprep.subr.mxu0 0.0
      %436 = vmatpush1.msra.mxu0 0.0
      %437 = vmatprep.subr.mxu0 0.0
      %438 = vmatpush1.msra.mxu0 0.0
      %439 = vmatprep.subr.mxu0 0.0
      %440 = vmatpush1.msra.mxu0 0.0
      %441 = vmatprep.subr.mxu0 0.0
      %442 = vmatpush1.msra.mxu0 0.0
      %443 = vmatprep.subr.mxu0 0.0
      %444 = vmatpush1.msra.mxu0 0.0
      %445 = vmatprep.subr.mxu0 0.0
      %446 = vmatpush1.msra.mxu0 0.0
      %447 = vmatprep.subr.mxu0 0.0
      %448 = vmatpush1.msra.mxu0 0.0
      %449 = vmatprep.subr.mxu0 0.0
      %450 = vmatpush1.msra.mxu0 0.0
      %451 = vmatprep.subr.mxu0 0.0
      %452 = vmatpush1.msra.mxu0 0.0
      %453 = vmatprep.subr.mxu0 0.0
      %454 = vmatpush1.msra.mxu0 0.0
      %455 = vmatprep.mubr.f32.mxu0 0.0
      %456 = vmatmul.mubr.f32.gmra.mrb[0].mxu0 %v389
      %v457 = vpop.f32.mrb[0].mxu0
      %v458 = vadd.f32 0.0, %v457
      %v459 = vpop.f32.mrb[0].mxu0
      %460 = vdwg.mxu0
      %s461 = scalar_lea.vmem %s1, 16
      %v462 = vld [vmem:[%s461] sm:$0xff]
      %v464 = vsel %vm308, %v462, 0
      %466 = vmatprep.subr.mxu0 0.0
      %467 = vmatpush1.msra.mxu0 %v304
      %468 = vmatprep.subr.mxu0 0.0
      %469 = vmatpush1.msra.mxu0 %v305
      %470 = vmatprep.subr.mxu0 0.0
      %471 = vmatpush1.msra.mxu0 %v314
      %472 = vmatprep.subr.mxu0 0.0
      %473 = vmatpush1.msra.mxu0 0.0
      %474 = vmatprep.subr.mxu0 0.0
      %475 = vmatpush1.msra.mxu0 0.0
      %476 = vmatprep.subr.mxu0 0.0
      %477 = vmatpush1.msra.mxu0 0.0
      %478 = vmatprep.subr.mxu0 0.0
      %479 = vmatpush1.msra.mxu0 0.0
      %480 = vmatprep.subr.mxu0 0.0
      %481 = vmatpush1.msra.mxu0 0.0
      %482 = vmatprep.subr.mxu0 0.0
      %483 = vmatpush1.msra.mxu0 0.0
      %484 = vmatprep.subr.mxu0 0.0
      %485 = vmatpush1.msra.mxu0 0.0
      %486 = vmatprep.subr.mxu0 0.0
      %487 = vmatpush1.msra.mxu0 0.0
      %488 = vmatprep.subr.mxu0 0.0
      %489 = vmatpush1.msra.mxu0 0.0
      %490 = vmatprep.subr.mxu0 0.0
      %491 = vmatpush1.msra.mxu0 0.0
      %492 = vmatprep.subr.mxu0 0.0
      %493 = vmatpush1.msra.mxu0 0.0
      %494 = vmatprep.subr.mxu0 0.0
      %495 = vmatpush1.msra.mxu0 0.0
      %496 = vmatprep.subr.mxu0 0.0
      %497 = vmatpush1.msra.mxu0 0.0
      %498 = vmatprep.subr.mxu0 0.0
      %499 = vmatpush1.msra.mxu0 0.0
      %500 = vmatprep.subr.mxu0 0.0
      %501 = vmatpush1.msra.mxu0 0.0
      %502 = vmatprep.subr.mxu0 0.0
      %503 = vmatpush1.msra.mxu0 0.0
      %504 = vmatprep.subr.mxu0 0.0
      %505 = vmatpush1.msra.mxu0 0.0
      %506 = vmatprep.subr.mxu0 0.0
      %507 = vmatpush1.msra.mxu0 0.0
      %508 = vmatprep.subr.mxu0 0.0
      %509 = vmatpush1.msra.mxu0 0.0
      %510 = vmatprep.subr.mxu0 0.0
      %511 = vmatpush1.msra.mxu0 0.0
      %512 = vmatprep.subr.mxu0 0.0
      %513 = vmatpush1.msra.mxu0 0.0
      %514 = vmatprep.subr.mxu0 0.0
      %515 = vmatpush1.msra.mxu0 0.0
      %516 = vmatprep.subr.mxu0 0.0
      %517 = vmatpush1.msra.mxu0 0.0
      %518 = vmatprep.subr.mxu0 0.0
      %519 = vmatpush1.msra.mxu0 0.0
      %520 = vmatprep.subr.mxu0 0.0
      %521 = vmatpush1.msra.mxu0 0.0
      %522 = vmatprep.subr.mxu0 0.0
      %523 = vmatpush1.msra.mxu0 0.0
      %524 = vmatprep.subr.mxu0 0.0
      %525 = vmatpush1.msra.mxu0 0.0
      %526 = vmatprep.subr.mxu0 0.0
      %527 = vmatpush1.msra.mxu0 0.0
      %528 = vmatprep.subr.mxu0 0.0
      %529 = vmatpush1.msra.mxu0 0.0
      %530 = vmatprep.mubr.f32.mxu0 0.0
      %531 = vmatmul.mubr.f32.gmra.mrb[0].mxu0 %v464
      %v532 = vpop.f32.mrb[0].mxu0
      %v533 = vadd.f32 0.0, %v532
      %v534 = vpop.f32.mrb[0].mxu0
      %535 = vdwg.mxu0
      %v536 = vld [vmem:[%s3] sm:$0xff]
      %v537 = vld [vmem:[%s3 + $0x8] sm:$0xff]
      %v538 = vld [vmem:[%s3 + $0x10] sm:$0xff]
      %v539 = vld [vmem:[%s3 + $0x18] sm:$0xff]
      %v540 = vld [vmem:[%s3 + $0x20] sm:$0xff]
      %v541 = vld [vmem:[%s3 + $0x28] sm:$0xff]
      %v542 = vld [vmem:[%s3 + $0x30] sm:$0xff]
      %v543 = vld [vmem:[%s3 + $0x38] sm:$0xff]
      %v544 = vld [vmem:[%s3 + $0x40] sm:$0xff]
      %s545 = scalar_lea.vmem %s3, 72
      %v546 = vld [vmem:[%s545] sm:$0xff]
      %v547 = vld [vmem:[%s545 + $0x8] sm:$0xff]
      %v548 = vld [vmem:[%s545 + $0x10] sm:$0xff]
      %v549 = vld [vmem:[%s545 + $0x18] sm:$0xff]
      %v550 = vld [vmem:[%s545 + $0x20] sm:$0xff]
      %v551 = vld [vmem:[%s545 + $0x28] sm:$0xff]
      %v552 = vld [vmem:[%s545 + $0x30] sm:$0xff]
      %v553 = vld [vmem:[%s545 + $0x38] sm:$0xff]
      %v554 = vld [vmem:[%s545 + $0x40] sm:$0xff]
      %vm555 = vcmask 588800
      %v557 = vsel %vm555, %v458, 0
      %559 = vmatprep.subr.mxu0 0.0
      %560 = vmatpush1.msra.mxu0 %v546
      %561 = vmatprep.subr.mxu0 0.0
      %562 = vmatpush1.msra.mxu0 %v547
      %563 = vmatprep.subr.mxu0 0.0
      %564 = vmatpush1.msra.mxu0 %v548
      %565 = vmatprep.subr.mxu0 0.0
      %566 = vmatpush1.msra.mxu0 %v549
      %567 = vmatprep.subr.mxu0 0.0
      %568 = vmatpush1.msra.mxu0 %v550
      %569 = vmatprep.subr.mxu0 0.0
      %570 = vmatpush1.msra.mxu0 %v551
      %571 = vmatprep.subr.mxu0 0.0
      %572 = vmatpush1.msra.mxu0 %v552
      %573 = vmatprep.subr.mxu0 0.0
      %574 = vmatpush1.msra.mxu0 %v553
      %575 = vmatprep.subr.mxu0 0.0
      %576 = vmatpush1.msra.mxu0 %v554
      %577 = vmatprep.subr.mxu0 0.0
      %578 = vmatpush1.msra.mxu0 0.0
      %579 = vmatprep.subr.mxu0 0.0
      %580 = vmatpush1.msra.mxu0 0.0
      %581 = vmatprep.subr.mxu0 0.0
      %582 = vmatpush1.msra.mxu0 0.0
      %583 = vmatprep.subr.mxu0 0.0
      %584 = vmatpush1.msra.mxu0 0.0
      %585 = vmatprep.subr.mxu0 0.0
      %586 = vmatpush1.msra.mxu0 0.0
      %587 = vmatprep.subr.mxu0 0.0
      %588 = vmatpush1.msra.mxu0 0.0
      %589 = vmatprep.subr.mxu0 0.0
      %590 = vmatpush1.msra.mxu0 0.0
      %591 = vmatprep.subr.mxu0 0.0
      %592 = vmatpush1.msra.mxu0 0.0
      %593 = vmatprep.subr.mxu0 0.0
      %594 = vmatpush1.msra.mxu0 0.0
      %595 = vmatprep.subr.mxu0 0.0
      %596 = vmatpush1.msra.mxu0 0.0
      %597 = vmatprep.subr.mxu0 0.0
      %598 = vmatpush1.msra.mxu0 0.0
      %599 = vmatprep.subr.mxu0 0.0
      %600 = vmatpush1.msra.mxu0 0.0
      %601 = vmatprep.subr.mxu0 0.0
      %602 = vmatpush1.msra.mxu0 0.0
      %603 = vmatprep.subr.mxu0 0.0
      %604 = vmatpush1.msra.mxu0 0.0
      %605 = vmatprep.subr.mxu0 0.0
      %606 = vmatpush1.msra.mxu0 0.0
      %607 = vmatprep.subr.mxu0 0.0
      %608 = vmatpush1.msra.mxu0 0.0
      %609 = vmatprep.subr.mxu0 0.0
      %610 = vmatpush1.msra.mxu0 0.0
      %611 = vmatprep.subr.mxu0 0.0
      %612 = vmatpush1.msra.mxu0 0.0
      %613 = vmatprep.subr.mxu0 0.0
      %614 = vmatpush1.msra.mxu0 0.0
      %615 = vmatprep.subr.mxu0 0.0
      %616 = vmatpush1.msra.mxu0 0.0
      %617 = vmatprep.subr.mxu0 0.0
      %618 = vmatpush1.msra.mxu0 0.0
      %619 = vmatprep.subr.mxu0 0.0
      %620 = vmatpush1.msra.mxu0 0.0
      %621 = vmatprep.subr.mxu0 0.0
      %622 = vmatpush1.msra.mxu0 0.0
      %623 = vmatprep.mubr.f32.mxu0 0.0
      %624 = vmatmul.mubr.f32.gmra.mrb[0].mxu0 %v557
      %v625 = vpop.f32.mrb[0].mxu0
      %v626 = vadd.f32 0.0, %v625
      %v627 = vpop.f32.mrb[0].mxu0
      %628 = vdwg.mxu0
      %v630 = vsel %vm555, %v383, 0
      %632 = vmatprep.subr.mxu0 0.0
      %633 = vmatpush1.msra.mxu0 %v536
      %634 = vmatprep.subr.mxu0 0.0
      %635 = vmatpush1.msra.mxu0 %v537
      %636 = vmatprep.subr.mxu0 0.0
      %637 = vmatpush1.msra.mxu0 %v538
      %638 = vmatprep.subr.mxu0 0.0
      %639 = vmatpush1.msra.mxu0 %v539
      %640 = vmatprep.subr.mxu0 0.0
      %641 = vmatpush1.msra.mxu0 %v540
      %642 = vmatprep.subr.mxu0 0.0
      %643 = vmatpush1.msra.mxu0 %v541
      %644 = vmatprep.subr.mxu0 0.0
      %645 = vmatpush1.msra.mxu0 %v542
      %646 = vmatprep.subr.mxu0 0.0
      %647 = vmatpush1.msra.mxu0 %v543
      %648 = vmatprep.subr.mxu0 0.0
      %649 = vmatpush1.msra.mxu0 %v544
      %650 = vmatprep.subr.mxu0 0.0
      %651 = vmatpush1.msra.mxu0 0.0
      %652 = vmatprep.subr.mxu0 0.0
      %653 = vmatpush1.msra.mxu0 0.0
      %654 = vmatprep.subr.mxu0 0.0
      %655 = vmatpush1.msra.mxu0 0.0
      %656 = vmatprep.subr.mxu0 0.0
      %657 = vmatpush1.msra.mxu0 0.0
      %658 = vmatprep.subr.mxu0 0.0
      %659 = vmatpush1.msra.mxu0 0.0
      %660 = vmatprep.subr.mxu0 0.0
      %661 = vmatpush1.msra.mxu0 0.0
      %662 = vmatprep.subr.mxu0 0.0
      %663 = vmatpush1.msra.mxu0 0.0
      %664 = vmatprep.subr.mxu0 0.0
      %665 = vmatpush1.msra.mxu0 0.0
      %666 = vmatprep.subr.mxu0 0.0
      %667 = vmatpush1.msra.mxu0 0.0
      %668 = vmatprep.subr.mxu0 0.0
      %669 = vmatpush1.msra.mxu0 0.0
      %670 = vmatprep.subr.mxu0 0.0
      %671 = vmatpush1.msra.mxu0 0.0
      %672 = vmatprep.subr.mxu0 0.0
      %673 = vmatpush1.msra.mxu0 0.0
      %674 = vmatprep.subr.mxu0 0.0
      %675 = vmatpush1.msra.mxu0 0.0
      %676 = vmatprep.subr.mxu0 0.0
      %677 = vmatpush1.msra.mxu0 0.0
      %678 = vmatprep.subr.mxu0 0.0
      %679 = vmatpush1.msra.mxu0 0.0
      %680 = vmatprep.subr.mxu0 0.0
      %681 = vmatpush1.msra.mxu0 0.0
      %682 = vmatprep.subr.mxu0 0.0
      %683 = vmatpush1.msra.mxu0 0.0
      %684 = vmatprep.subr.mxu0 0.0
      %685 = vmatpush1.msra.mxu0 0.0
      %686 = vmatprep.subr.mxu0 0.0
      %687 = vmatpush1.msra.mxu0 0.0
      %688 = vmatprep.subr.mxu0 0.0
      %689 = vmatpush1.msra.mxu0 0.0
      %690 = vmatprep.subr.mxu0 0.0
      %691 = vmatpush1.msra.mxu0 0.0
      %692 = vmatprep.subr.mxu0 0.0
      %693 = vmatpush1.msra.mxu0 0.0
      %694 = vmatprep.subr.mxu0 0.0
      %695 = vmatpush1.msra.mxu0 0.0
      %696 = vmatprep.mubr.f32.mxu0 0.0
      %697 = vmatmul.mubr.f32.gmra.mrb[0].mxu0 %v630
      %v698 = vpop.f32.mrb[0].mxu0
      %v699 = vadd.f32 %v626, %v698
      %v700 = vpop.f32.mrb[0].mxu0
      %701 = vdwg.mxu0
      %s702 = scalar_lea.vmem %s3, 144
      %v703 = vld [vmem:[%s702] sm:$0xff]
      %v704 = vld [vmem:[%s702 + $0x8] sm:$0xff]
      %v705 = vld [vmem:[%s702 + $0x10] sm:$0xff]
      %v706 = vld [vmem:[%s702 + $0x18] sm:$0xff]
      %v707 = vld [vmem:[%s702 + $0x20] sm:$0xff]
      %v708 = vld [vmem:[%s702 + $0x28] sm:$0xff]
      %v709 = vld [vmem:[%s702 + $0x30] sm:$0xff]
      %v710 = vld [vmem:[%s702 + $0x38] sm:$0xff]
      %v711 = vld [vmem:[%s702 + $0x40] sm:$0xff]
      %v713 = vsel %vm555, %v533, 0
      %715 = vmatprep.subr.mxu0 0.0
      %716 = vmatpush1.msra.mxu0 %v703
      %717 = vmatprep.subr.mxu0 0.0
      %718 = vmatpush1.msra.mxu0 %v704
      %719 = vmatprep.subr.mxu0 0.0
      %720 = vmatpush1.msra.mxu0 %v705
      %721 = vmatprep.subr.mxu0 0.0
      %722 = vmatpush1.msra.mxu0 %v706
      %723 = vmatprep.subr.mxu0 0.0
      %724 = vmatpush1.msra.mxu0 %v707
      %725 = vmatprep.subr.mxu0 0.0
      %726 = vmatpush1.msra.mxu0 %v708
      %727 = vmatprep.subr.mxu0 0.0
      %728 = vmatpush1.msra.mxu0 %v709
      %729 = vmatprep.subr.mxu0 0.0
      %730 = vmatpush1.msra.mxu0 %v710
      %731 = vmatprep.subr.mxu0 0.0
      %732 = vmatpush1.msra.mxu0 %v711
      %733 = vmatprep.subr.mxu0 0.0
      %734 = vmatpush1.msra.mxu0 0.0
      %735 = vmatprep.subr.mxu0 0.0
      %736 = vmatpush1.msra.mxu0 0.0
      %737 = vmatprep.subr.mxu0 0.0
      %738 = vmatpush1.msra.mxu0 0.0
      %739 = vmatprep.subr.mxu0 0.0
      %740 = vmatpush1.msra.mxu0 0.0
      %741 = vmatprep.subr.mxu0 0.0
      %742 = vmatpush1.msra.mxu0 0.0
      %743 = vmatprep.subr.mxu0 0.0
      %744 = vmatpush1.msra.mxu0 0.0
      %745 = vmatprep.subr.mxu0 0.0
      %746 = vmatpush1.msra.mxu0 0.0
      %747 = vmatprep.subr.mxu0 0.0
      %748 = vmatpush1.msra.mxu0 0.0
      %749 = vmatprep.subr.mxu0 0.0
      %750 = vmatpush1.msra.mxu0 0.0
      %751 = vmatprep.subr.mxu0 0.0
      %752 = vmatpush1.msra.mxu0 0.0
      %753 = vmatprep.subr.mxu0 0.0
      %754 = vmatpush1.msra.mxu0 0.0
      %755 = vmatprep.subr.mxu0 0.0
      %756 = vmatpush1.msra.mxu0 0.0
      %757 = vmatprep.subr.mxu0 0.0
      %758 = vmatpush1.msra.mxu0 0.0
      %759 = vmatprep.subr.mxu0 0.0
      %760 = vmatpush1.msra.mxu0 0.0
      %761 = vmatprep.subr.mxu0 0.0
      %762 = vmatpush1.msra.mxu0 0.0
      %763 = vmatprep.subr.mxu0 0.0
      %764 = vmatpush1.msra.mxu0 0.0
      %765 = vmatprep.subr.mxu0 0.0
      %766 = vmatpush1.msra.mxu0 0.0
      %767 = vmatprep.subr.mxu0 0.0
      %768 = vmatpush1.msra.mxu0 0.0
      %769 = vmatprep.subr.mxu0 0.0
      %770 = vmatpush1.msra.mxu0 0.0
      %771 = vmatprep.subr.mxu0 0.0
      %772 = vmatpush1.msra.mxu0 0.0
      %773 = vmatprep.subr.mxu0 0.0
      %774 = vmatpush1.msra.mxu0 0.0
      %775 = vmatprep.subr.mxu0 0.0
      %776 = vmatpush1.msra.mxu0 0.0
      %777 = vmatprep.subr.mxu0 0.0
      %778 = vmatpush1.msra.mxu0 0.0
      %779 = vmatprep.mubr.f32.mxu0 0.0
      %780 = vmatmul.mubr.f32.gmra.mrb[0].mxu0 %v713
      %v781 = vpop.f32.mrb[0].mxu0
      %v782 = vadd.f32 0.0, %v781
      %v783 = vpop.f32.mrb[0].mxu0
      %784 = vdwg.mxu0
      %v785 = vadd.f32 %v699, %v782
      %v786 = vld [vmem:[%s6] sm:$0x1]
      %v788 = vlaneseq
      %v789 = vshrl.u32 %v788, 7
      %v790 = vsub.s32 0, %v789
      %v791 = vrot.slane %v786, %v790
      %v793 = vadd.f32 %v785, %v791
      %v794 = vmax.f32 %v793, 0.0
      %v795 = vld [vmem:[%s5] sm:$0xff]
      %v796 = vld [vmem:[%s5 + $0x8] sm:$0xff]
      %v797 = vld [vmem:[%s5 + $0x10] sm:$0xff]
      %v798 = vld [vmem:[%s5 + $0x18] sm:$0xff]
      %v799 = vld [vmem:[%s5 + $0x20] sm:$0xff]
      %v800 = vld [vmem:[%s5 + $0x28] sm:$0xff]
      %v801 = vld [vmem:[%s5 + $0x30] sm:$0xff]
      %v802 = vld [vmem:[%s5 + $0x38] sm:$0xff]
      %v803 = vld [vmem:[%s5 + $0x40] sm:$0xff]
      %v804 = vld [vmem:[%s4] sm:$0xff]
      %v805 = vld [vmem:[%s4 + $0x8] sm:$0xff]
      %v806 = vld [vmem:[%s4 + $0x10] sm:$0xff]
      %v807 = vld [vmem:[%s4 + $0x18] sm:$0xff]
      %v808 = vld [vmem:[%s4 + $0x20] sm:$0xff]
      %v809 = vld [vmem:[%s4 + $0x28] sm:$0xff]
      %v810 = vld [vmem:[%s4 + $0x30] sm:$0xff]
      %v811 = vld [vmem:[%s4 + $0x38] sm:$0xff]
      %vm812 = vcmask 523264
      %v814 = vsel %vm812, %v794, 0
      %816 = vmatprep.subr.mxu0 0.0
      %817 = vmatpush1.msra.mxu0 %v804
      %818 = vmatprep.subr.mxu0 0.0
      %819 = vmatpush1.msra.mxu0 %v805
      %820 = vmatprep.subr.mxu0 0.0
      %821 = vmatpush1.msra.mxu0 %v806
      %822 = vmatprep.subr.mxu0 0.0
      %823 = vmatpush1.msra.mxu0 %v807
      %824 = vmatprep.subr.mxu0 0.0
      %825 = vmatpush1.msra.mxu0 %v808
      %826 = vmatprep.subr.mxu0 0.0
      %827 = vmatpush1.msra.mxu0 %v809
      %828 = vmatprep.subr.mxu0 0.0
      %829 = vmatpush1.msra.mxu0 %v810
      %830 = vmatprep.subr.mxu0 0.0
      %831 = vmatpush1.msra.mxu0 %v811
      %832 = vmatprep.subr.mxu0 0.0
      %833 = vmatpush1.msra.mxu0 0.0
      %834 = vmatprep.subr.mxu0 0.0
      %835 = vmatpush1.msra.mxu0 0.0
      %836 = vmatprep.subr.mxu0 0.0
      %837 = vmatpush1.msra.mxu0 0.0
      %838 = vmatprep.subr.mxu0 0.0
      %839 = vmatpush1.msra.mxu0 0.0
      %840 = vmatprep.subr.mxu0 0.0
      %841 = vmatpush1.msra.mxu0 0.0
      %842 = vmatprep.subr.mxu0 0.0
      %843 = vmatpush1.msra.mxu0 0.0
      %844 = vmatprep.subr.mxu0 0.0
      %845 = vmatpush1.msra.mxu0 0.0
      %846 = vmatprep.subr.mxu0 0.0
      %847 = vmatpush1.msra.mxu0 0.0
      %848 = vmatprep.subr.mxu0 0.0
      %849 = vmatpush1.msra.mxu0 0.0
      %850 = vmatprep.subr.mxu0 0.0
      %851 = vmatpush1.msra.mxu0 0.0
      %852 = vmatprep.subr.mxu0 0.0
      %853 = vmatpush1.msra.mxu0 0.0
      %854 = vmatprep.subr.mxu0 0.0
      %855 = vmatpush1.msra.mxu0 0.0
      %856 = vmatprep.subr.mxu0 0.0
      %857 = vmatpush1.msra.mxu0 0.0
      %858 = vmatprep.subr.mxu0 0.0
      %859 = vmatpush1.msra.mxu0 0.0
      %860 = vmatprep.subr.mxu0 0.0
      %861 = vmatpush1.msra.mxu0 0.0
      %862 = vmatprep.subr.mxu0 0.0
      %863 = vmatpush1.msra.mxu0 0.0
      %864 = vmatprep.subr.mxu0 0.0
      %865 = vmatpush1.msra.mxu0 0.0
      %866 = vmatprep.subr.mxu0 0.0
      %867 = vmatpush1.msra.mxu0 0.0
      %868 = vmatprep.subr.mxu0 0.0
      %869 = vmatpush1.msra.mxu0 0.0
      %870 = vmatprep.subr.mxu0 0.0
      %871 = vmatpush1.msra.mxu0 0.0
      %872 = vmatprep.subr.mxu0 0.0
      %873 = vmatpush1.msra.mxu0 0.0
      %874 = vmatprep.subr.mxu0 0.0
      %875 = vmatpush1.msra.mxu0 0.0
      %876 = vmatprep.subr.mxu0 0.0
      %877 = vmatpush1.msra.mxu0 0.0
      %878 = vmatprep.subr.mxu0 0.0
      %879 = vmatpush1.msra.mxu0 0.0
      %880 = vmatprep.mubr.f32.mxu0 0.0
      %881 = vmatmul.mubr.f32.gmra.mrb[0].mxu0 %v814
      %v882 = vpop.f32.mrb[0].mxu0
      %v883 = vadd.f32 0.0, %v882
      %v884 = vpop.f32.mrb[0].mxu0
      %885 = vdwg.mxu0
      %v886 = vld [vmem:[%s2] sm:$0xff]
      %vm887 = vcmask 64512
      %v889 = vsel %vm887, %v886, 0
      %891 = vmatprep.subr.mxu0 0.0
      %892 = vmatpush1.msra.mxu0 %v883
      %893 = vmatprep.subr.mxu0 0.0
      %894 = vmatpush1.msra.mxu0 0.0
      %895 = vmatprep.subr.mxu0 0.0
      %896 = vmatpush1.msra.mxu0 0.0
      %897 = vmatprep.subr.mxu0 0.0
      %898 = vmatpush1.msra.mxu0 0.0
      %899 = vmatprep.subr.mxu0 0.0
      %900 = vmatpush1.msra.mxu0 0.0
      %901 = vmatprep.subr.mxu0 0.0
      %902 = vmatpush1.msra.mxu0 0.0
      %903 = vmatprep.subr.mxu0 0.0
      %904 = vmatpush1.msra.mxu0 0.0
      %905 = vmatprep.subr.mxu0 0.0
      %906 = vmatpush1.msra.mxu0 0.0
      %907 = vmatprep.subr.mxu0 0.0
      %908 = vmatpush1.msra.mxu0 0.0
      %909 = vmatprep.subr.mxu0 0.0
      %910 = vmatpush1.msra.mxu0 0.0
      %911 = vmatprep.subr.mxu0 0.0
      %912 = vmatpush1.msra.mxu0 0.0
      %913 = vmatprep.subr.mxu0 0.0
      %914 = vmatpush1.msra.mxu0 0.0
      %915 = vmatprep.subr.mxu0 0.0
      %916 = vmatpush1.msra.mxu0 0.0
      %917 = vmatprep.subr.mxu0 0.0
      %918 = vmatpush1.msra.mxu0 0.0
      %919 = vmatprep.subr.mxu0 0.0
      %920 = vmatpush1.msra.mxu0 0.0
      %921 = vmatprep.subr.mxu0 0.0
      %922 = vmatpush1.msra.mxu0 0.0
      %923 = vmatprep.subr.mxu0 0.0
      %924 = vmatpush1.msra.mxu0 0.0
      %925 = vmatprep.subr.mxu0 0.0
      %926 = vmatpush1.msra.mxu0 0.0
      %927 = vmatprep.subr.mxu0 0.0
      %928 = vmatpush1.msra.mxu0 0.0
      %929 = vmatprep.subr.mxu0 0.0
      %930 = vmatpush1.msra.mxu0 0.0
      %931 = vmatprep.subr.mxu0 0.0
      %932 = vmatpush1.msra.mxu0 0.0
      %933 = vmatprep.subr.mxu0 0.0
      %934 = vmatpush1.msra.mxu0 0.0
      %935 = vmatprep.subr.mxu0 0.0
      %936 = vmatpush1.msra.mxu0 0.0
      %937 = vmatprep.subr.mxu0 0.0
      %938 = vmatpush1.msra.mxu0 0.0
      %939 = vmatprep.subr.mxu0 0.0
      %940 = vmatpush1.msra.mxu0 0.0
      %941 = vmatprep.subr.mxu0 0.0
      %942 = vmatpush1.msra.mxu0 0.0
      %943 = vmatprep.subr.mxu0 0.0
      %944 = vmatpush1.msra.mxu0 0.0
      %945 = vmatprep.subr.mxu0 0.0
      %946 = vmatpush1.msra.mxu0 0.0
      %947 = vmatprep.subr.mxu0 0.0
      %948 = vmatpush1.msra.mxu0 0.0
      %949 = vmatprep.subr.mxu0 0.0
      %950 = vmatpush1.msra.mxu0 0.0
      %951 = vmatprep.subr.mxu0 0.0
      %952 = vmatpush1.msra.mxu0 0.0
      %953 = vmatprep.subr.mxu0 0.0
      %954 = vmatpush1.msra.mxu0 0.0
      %955 = vmatprep.mubr.f32.mxu0 0.0
      %956 = vmatmul.mubr.f32.gmra.mrb[0].mxu0 %v889
      %v957 = vpop.f32.mrb[0].mxu0
      %v958 = vadd.f32 0.0, %v957
      %v959 = vpop.f32.mrb[0].mxu0
      %960 = vdwg.mxu0
      %961 = vmatprep.subr.mxu0 0.0
      %962 = vmatpush1.msra.mxu0 %v795
      %963 = vmatprep.subr.mxu0 0.0
      %964 = vmatpush1.msra.mxu0 %v796
      %965 = vmatprep.subr.mxu0 0.0
      %966 = vmatpush1.msra.mxu0 %v797
      %967 = vmatprep.subr.mxu0 0.0
      %968 = vmatpush1.msra.mxu0 %v798
      %969 = vmatprep.subr.mxu0 0.0
      %970 = vmatpush1.msra.mxu0 %v799
      %971 = vmatprep.subr.mxu0 0.0
      %972 = vmatpush1.msra.mxu0 %v800
      %973 = vmatprep.subr.mxu0 0.0
      %974 = vmatpush1.msra.mxu0 %v801
      %975 = vmatprep.subr.mxu0 0.0
      %976 = vmatpush1.msra.mxu0 %v802
      %977 = vmatprep.subr.mxu0 0.0
      %978 = vmatpush1.msra.mxu0 %v803
      %979 = vmatprep.subr.mxu0 0.0
      %980 = vmatpush1.msra.mxu0 0.0
      %981 = vmatprep.subr.mxu0 0.0
      %982 = vmatpush1.msra.mxu0 0.0
      %983 = vmatprep.subr.mxu0 0.0
      %984 = vmatpush1.msra.mxu0 0.0
      %985 = vmatprep.subr.mxu0 0.0
      %986 = vmatpush1.msra.mxu0 0.0
      %987 = vmatprep.subr.mxu0 0.0
      %988 = vmatpush1.msra.mxu0 0.0
      %989 = vmatprep.subr.mxu0 0.0
      %990 = vmatpush1.msra.mxu0 0.0
      %991 = vmatprep.subr.mxu0 0.0
      %992 = vmatpush1.msra.mxu0 0.0
      %993 = vmatprep.subr.mxu0 0.0
      %994 = vmatpush1.msra.mxu0 0.0
      %995 = vmatprep.subr.mxu0 0.0
      %996 = vmatpush1.msra.mxu0 0.0
      %997 = vmatprep.subr.mxu0 0.0
      %998 = vmatpush1.msra.mxu0 0.0
      %999 = vmatprep.subr.mxu0 0.0
      %1000 = vmatpush1.msra.mxu0 0.0
      %1001 = vmatprep.subr.mxu0 0.0
      %1002 = vmatpush1.msra.mxu0 0.0
      %1003 = vmatprep.subr.mxu0 0.0
      %1004 = vmatpush1.msra.mxu0 0.0
      %1005 = vmatprep.subr.mxu0 0.0
      %1006 = vmatpush1.msra.mxu0 0.0
      %1007 = vmatprep.subr.mxu0 0.0
      %1008 = vmatpush1.msra.mxu0 0.0
      %1009 = vmatprep.subr.mxu0 0.0
      %1010 = vmatpush1.msra.mxu0 0.0
      %1011 = vmatprep.subr.mxu0 0.0
      %1012 = vmatpush1.msra.mxu0 0.0
      %1013 = vmatprep.subr.mxu0 0.0
      %1014 = vmatpush1.msra.mxu0 0.0
      %1015 = vmatprep.subr.mxu0 0.0
      %1016 = vmatpush1.msra.mxu0 0.0
      %1017 = vmatprep.subr.mxu0 0.0
      %1018 = vmatpush1.msra.mxu0 0.0
      %1019 = vmatprep.subr.mxu0 0.0
      %1020 = vmatpush1.msra.mxu0 0.0
      %1021 = vmatprep.subr.mxu0 0.0
      %1022 = vmatpush1.msra.mxu0 0.0
      %1023 = vmatprep.subr.mxu0 0.0
      %1024 = vmatpush1.msra.mxu0 0.0
      %1025 = vmatprep.mubr.f32.mxu0 0.0
      %1026 = vmatmul.mubr.f32.gmra.mrb[0].mxu0 %v557
      %v1027 = vpop.f32.mrb[0].mxu0
      %v1028 = vadd.f32 %v958, %v1027
      %v1029 = vpop.f32.mrb[0].mxu0
      %1030 = vdwg.mxu0
      %s1031 = scalar_lea.vmem %s4, 64
      %v1032 = vld [vmem:[%s1031] sm:$0xff]
      %v1033 = vld [vmem:[%s1031 + $0x8] sm:$0xff]
      %v1034 = vld [vmem:[%s1031 + $0x10] sm:$0xff]
      %v1035 = vld [vmem:[%s1031 + $0x18] sm:$0xff]
      %v1036 = vld [vmem:[%s1031 + $0x20] sm:$0xff]
      %v1037 = vld [vmem:[%s1031 + $0x28] sm:$0xff]
      %v1038 = vld [vmem:[%s1031 + $0x30] sm:$0xff]
      %v1039 = vld [vmem:[%s1031 + $0x38] sm:$0xff]
      %1040 = vmatprep.subr.mxu0 0.0
      %1041 = vmatpush1.msra.mxu0 %v1032
      %1042 = vmatprep.subr.mxu0 0.0
      %1043 = vmatpush1.msra.mxu0 %v1033
      %1044 = vmatprep.subr.mxu0 0.0
      %1045 = vmatpush1.msra.mxu0 %v1034
      %1046 = vmatprep.subr.mxu0 0.0
      %1047 = vmatpush1.msra.mxu0 %v1035
      %1048 = vmatprep.subr.mxu0 0.0
      %1049 = vmatpush1.msra.mxu0 %v1036
      %1050 = vmatprep.subr.mxu0 0.0
      %1051 = vmatpush1.msra.mxu0 %v1037
      %1052 = vmatprep.subr.mxu0 0.0
      %1053 = vmatpush1.msra.mxu0 %v1038
      %1054 = vmatprep.subr.mxu0 0.0
      %1055 = vmatpush1.msra.mxu0 %v1039
      %1056 = vmatprep.subr.mxu0 0.0
      %1057 = vmatpush1.msra.mxu0 0.0
      %1058 = vmatprep.subr.mxu0 0.0
      %1059 = vmatpush1.msra.mxu0 0.0
      %1060 = vmatprep.subr.mxu0 0.0
      %1061 = vmatpush1.msra.mxu0 0.0
      %1062 = vmatprep.subr.mxu0 0.0
      %1063 = vmatpush1.msra.mxu0 0.0
      %1064 = vmatprep.subr.mxu0 0.0
      %1065 = vmatpush1.msra.mxu0 0.0
      %1066 = vmatprep.subr.mxu0 0.0
      %1067 = vmatpush1.msra.mxu0 0.0
      %1068 = vmatprep.subr.mxu0 0.0
      %1069 = vmatpush1.msra.mxu0 0.0
      %1070 = vmatprep.subr.mxu0 0.0
      %1071 = vmatpush1.msra.mxu0 0.0
      %1072 = vmatprep.subr.mxu0 0.0
      %1073 = vmatpush1.msra.mxu0 0.0
      %1074 = vmatprep.subr.mxu0 0.0
      %1075 = vmatpush1.msra.mxu0 0.0
      %1076 = vmatprep.subr.mxu0 0.0
      %1077 = vmatpush1.msra.mxu0 0.0
      %1078 = vmatprep.subr.mxu0 0.0
      %1079 = vmatpush1.msra.mxu0 0.0
      %1080 = vmatprep.subr.mxu0 0.0
      %1081 = vmatpush1.msra.mxu0 0.0
      %1082 = vmatprep.subr.mxu0 0.0
      %1083 = vmatpush1.msra.mxu0 0.0
      %1084 = vmatprep.subr.mxu0 0.0
      %1085 = vmatpush1.msra.mxu0 0.0
      %1086 = vmatprep.subr.mxu0 0.0
      %1087 = vmatpush1.msra.mxu0 0.0
      %1088 = vmatprep.subr.mxu0 0.0
      %1089 = vmatpush1.msra.mxu0 0.0
      %1090 = vmatprep.subr.mxu0 0.0
      %1091 = vmatpush1.msra.mxu0 0.0
      %1092 = vmatprep.subr.mxu0 0.0
      %1093 = vmatpush1.msra.mxu0 0.0
      %1094 = vmatprep.subr.mxu0 0.0
      %1095 = vmatpush1.msra.mxu0 0.0
      %1096 = vmatprep.subr.mxu0 0.0
      %1097 = vmatpush1.msra.mxu0 0.0
      %1098 = vmatprep.subr.mxu0 0.0
      %1099 = vmatpush1.msra.mxu0 0.0
      %1100 = vmatprep.subr.mxu0 0.0
      %1101 = vmatpush1.msra.mxu0 0.0
      %1102 = vmatprep.subr.mxu0 0.0
      %1103 = vmatpush1.msra.mxu0 0.0
      %1104 = vmatprep.mubr.f32.mxu0 0.0
      %1105 = vmatmul.mubr.f32.gmra.mrb[0].mxu0 %v814
      %v1106 = vpop.f32.mrb[0].mxu0
      %v1107 = vadd.f32 0.0, %v1106
      %v1108 = vpop.f32.mrb[0].mxu0
      %1109 = vdwg.mxu0
      %s1110 = scalar_lea.vmem %s2, 8
      %v1111 = vld [vmem:[%s1110] sm:$0xff]
      %v1113 = vsel %vm887, %v1111, 0
      %1115 = vmatprep.subr.mxu0 0.0
      %1116 = vmatpush1.msra.mxu0 %v1107
      %1117 = vmatprep.subr.mxu0 0.0
      %1118 = vmatpush1.msra.mxu0 0.0
      %1119 = vmatprep.subr.mxu0 0.0
      %1120 = vmatpush1.msra.mxu0 0.0
      %1121 = vmatprep.subr.mxu0 0.0
      %1122 = vmatpush1.msra.mxu0 0.0
      %1123 = vmatprep.subr.mxu0 0.0
      %1124 = vmatpush1.msra.mxu0 0.0
      %1125 = vmatprep.subr.mxu0 0.0
      %1126 = vmatpush1.msra.mxu0 0.0
      %1127 = vmatprep.subr.mxu0 0.0
      %1128 = vmatpush1.msra.mxu0 0.0
      %1129 = vmatprep.subr.mxu0 0.0
      %1130 = vmatpush1.msra.mxu0 0.0
      %1131 = vmatprep.subr.mxu0 0.0
      %1132 = vmatpush1.msra.mxu0 0.0
      %1133 = vmatprep.subr.mxu0 0.0
      %1134 = vmatpush1.msra.mxu0 0.0
      %1135 = vmatprep.subr.mxu0 0.0
      %1136 = vmatpush1.msra.mxu0 0.0
      %1137 = vmatprep.subr.mxu0 0.0
      %1138 = vmatpush1.msra.mxu0 0.0
      %1139 = vmatprep.subr.mxu0 0.0
      %1140 = vmatpush1.msra.mxu0 0.0
      %1141 = vmatprep.subr.mxu0 0.0
      %1142 = vmatpush1.msra.mxu0 0.0
      %1143 = vmatprep.subr.mxu0 0.0
      %1144 = vmatpush1.msra.mxu0 0.0
      %1145 = vmatprep.subr.mxu0 0.0
      %1146 = vmatpush1.msra.mxu0 0.0
      %1147 = vmatprep.subr.mxu0 0.0
      %1148 = vmatpush1.msra.mxu0 0.0
      %1149 = vmatprep.subr.mxu0 0.0
      %1150 = vmatpush1.msra.mxu0 0.0
      %1151 = vmatprep.subr.mxu0 0.0
      %1152 = vmatpush1.msra.mxu0 0.0
      %1153 = vmatprep.subr.mxu0 0.0
      %1154 = vmatpush1.msra.mxu0 0.0
      %1155 = vmatprep.subr.mxu0 0.0
      %1156 = vmatpush1.msra.mxu0 0.0
      %1157 = vmatprep.subr.mxu0 0.0
      %1158 = vmatpush1.msra.mxu0 0.0
      %1159 = vmatprep.subr.mxu0 0.0
      %1160 = vmatpush1.msra.mxu0 0.0
      %1161 = vmatprep.subr.mxu0 0.0
      %1162 = vmatpush1.msra.mxu0 0.0
      %1163 = vmatprep.subr.mxu0 0.0
      %1164 = vmatpush1.msra.mxu0 0.0
      %1165 = vmatprep.subr.mxu0 0.0
      %1166 = vmatpush1.msra.mxu0 0.0
      %1167 = vmatprep.subr.mxu0 0.0
      %1168 = vmatpush1.msra.mxu0 0.0
      %1169 = vmatprep.subr.mxu0 0.0
      %1170 = vmatpush1.msra.mxu0 0.0
      %1171 = vmatprep.subr.mxu0 0.0
      %1172 = vmatpush1.msra.mxu0 0.0
      %1173 = vmatprep.subr.mxu0 0.0
      %1174 = vmatpush1.msra.mxu0 0.0
      %1175 = vmatprep.subr.mxu0 0.0
      %1176 = vmatpush1.msra.mxu0 0.0
      %1177 = vmatprep.subr.mxu0 0.0
      %1178 = vmatpush1.msra.mxu0 0.0
      %1179 = vmatprep.mubr.f32.mxu0 0.0
      %1180 = vmatmul.mubr.f32.gmra.mrb[0].mxu0 %v1113
      %v1181 = vpop.f32.mrb[0].mxu0
      %v1182 = vadd.f32 0.0, %v1181
      %v1183 = vpop.f32.mrb[0].mxu0
      %1184 = vdwg.mxu0
      %v1185 = vadd.f32 %v1028, %v1182
      %s1186 = scalar_lea.vmem %s4, 128
      %v1187 = vld [vmem:[%s1186] sm:$0xff]
      %v1188 = vld [vmem:[%s1186 + $0x8] sm:$0xff]
      %v1189 = vld [vmem:[%s1186 + $0x10] sm:$0xff]
      %v1190 = vld [vmem:[%s1186 + $0x18] sm:$0xff]
      %v1191 = vld [vmem:[%s1186 + $0x20] sm:$0xff]
      %v1192 = vld [vmem:[%s1186 + $0x28] sm:$0xff]
      %v1193 = vld [vmem:[%s1186 + $0x30] sm:$0xff]
      %v1194 = vld [vmem:[%s1186 + $0x38] sm:$0xff]
      %1195 = vmatprep.subr.mxu0 0.0
      %1196 = vmatpush1.msra.mxu0 %v1187
      %1197 = vmatprep.subr.mxu0 0.0
      %1198 = vmatpush1.msra.mxu0 %v1188
      %1199 = vmatprep.subr.mxu0 0.0
      %1200 = vmatpush1.msra.mxu0 %v1189
      %1201 = vmatprep.subr.mxu0 0.0
      %1202 = vmatpush1.msra.mxu0 %v1190
      %1203 = vmatprep.subr.mxu0 0.0
      %1204 = vmatpush1.msra.mxu0 %v1191
      %1205 = vmatprep.subr.mxu0 0.0
      %1206 = vmatpush1.msra.mxu0 %v1192
      %1207 = vmatprep.subr.mxu0 0.0
      %1208 = vmatpush1.msra.mxu0 %v1193
      %1209 = vmatprep.subr.mxu0 0.0
      %1210 = vmatpush1.msra.mxu0 %v1194
      %1211 = vmatprep.subr.mxu0 0.0
      %1212 = vmatpush1.msra.mxu0 0.0
      %1213 = vmatprep.subr.mxu0 0.0
      %1214 = vmatpush1.msra.mxu0 0.0
      %1215 = vmatprep.subr.mxu0 0.0
      %1216 = vmatpush1.msra.mxu0 0.0
      %1217 = vmatprep.subr.mxu0 0.0
      %1218 = vmatpush1.msra.mxu0 0.0
      %1219 = vmatprep.subr.mxu0 0.0
      %1220 = vmatpush1.msra.mxu0 0.0
      %1221 = vmatprep.subr.mxu0 0.0
      %1222 = vmatpush1.msra.mxu0 0.0
      %1223 = vmatprep.subr.mxu0 0.0
      %1224 = vmatpush1.msra.mxu0 0.0
      %1225 = vmatprep.subr.mxu0 0.0
      %1226 = vmatpush1.msra.mxu0 0.0
      %1227 = vmatprep.subr.mxu0 0.0
      %1228 = vmatpush1.msra.mxu0 0.0
      %1229 = vmatprep.subr.mxu0 0.0
      %1230 = vmatpush1.msra.mxu0 0.0
      %1231 = vmatprep.subr.mxu0 0.0
      %1232 = vmatpush1.msra.mxu0 0.0
      %1233 = vmatprep.subr.mxu0 0.0
      %1234 = vmatpush1.msra.mxu0 0.0
      %1235 = vmatprep.subr.mxu0 0.0
      %1236 = vmatpush1.msra.mxu0 0.0
      %1237 = vmatprep.subr.mxu0 0.0
      %1238 = vmatpush1.msra.mxu0 0.0
      %1239 = vmatprep.subr.mxu0 0.0
      %1240 = vmatpush1.msra.mxu0 0.0
      %1241 = vmatprep.subr.mxu0 0.0
      %1242 = vmatpush1.msra.mxu0 0.0
      %1243 = vmatprep.subr.mxu0 0.0
      %1244 = vmatpush1.msra.mxu0 0.0
      %1245 = vmatprep.subr.mxu0 0.0
      %1246 = vmatpush1.msra.mxu0 0.0
      %1247 = vmatprep.subr.mxu0 0.0
      %1248 = vmatpush1.msra.mxu0 0.0
      %1249 = vmatprep.subr.mxu0 0.0
      %1250 = vmatpush1.msra.mxu0 0.0
      %1251 = vmatprep.subr.mxu0 0.0
      %1252 = vmatpush1.msra.mxu0 0.0
      %1253 = vmatprep.subr.mxu0 0.0
      %1254 = vmatpush1.msra.mxu0 0.0
      %1255 = vmatprep.subr.mxu0 0.0
      %1256 = vmatpush1.msra.mxu0 0.0
      %1257 = vmatprep.subr.mxu0 0.0
      %1258 = vmatpush1.msra.mxu0 0.0
      %1259 = vmatprep.mubr.f32.mxu0 0.0
      %1260 = vmatmul.mubr.f32.gmra.mrb[0].mxu0 %v814
      %v1261 = vpop.f32.mrb[0].mxu0
      %v1262 = vadd.f32 0.0, %v1261
      %v1263 = vpop.f32.mrb[0].mxu0
      %1264 = vdwg.mxu0
      %s1265 = scalar_lea.vmem %s2, 16
      %v1266 = vld [vmem:[%s1265] sm:$0xff]
      %v1268 = vsel %vm887, %v1266, 0
      %1270 = vmatprep.subr.mxu0 0.0
      %1271 = vmatpush1.msra.mxu0 %v1262
      %1272 = vmatprep.subr.mxu0 0.0
      %1273 = vmatpush1.msra.mxu0 0.0
      %1274 = vmatprep.subr.mxu0 0.0
      %1275 = vmatpush1.msra.mxu0 0.0
      %1276 = vmatprep.subr.mxu0 0.0
      %1277 = vmatpush1.msra.mxu0 0.0
      %1278 = vmatprep.subr.mxu0 0.0
      %1279 = vmatpush1.msra.mxu0 0.0
      %1280 = vmatprep.subr.mxu0 0.0
      %1281 = vmatpush1.msra.mxu0 0.0
      %1282 = vmatprep.subr.mxu0 0.0
      %1283 = vmatpush1.msra.mxu0 0.0
      %1284 = vmatprep.subr.mxu0 0.0
      %1285 = vmatpush1.msra.mxu0 0.0
      %1286 = vmatprep.subr.mxu0 0.0
      %1287 = vmatpush1.msra.mxu0 0.0
      %1288 = vmatprep.subr.mxu0 0.0
      %1289 = vmatpush1.msra.mxu0 0.0
      %1290 = vmatprep.subr.mxu0 0.0
      %1291 = vmatpush1.msra.mxu0 0.0
      %1292 = vmatprep.subr.mxu0 0.0
      %1293 = vmatpush1.msra.mxu0 0.0
      %1294 = vmatprep.subr.mxu0 0.0
      %1295 = vmatpush1.msra.mxu0 0.0
      %1296 = vmatprep.subr.mxu0 0.0
      %1297 = vmatpush1.msra.mxu0 0.0
      %1298 = vmatprep.subr.mxu0 0.0
      %1299 = vmatpush1.msra.mxu0 0.0
      %1300 = vmatprep.subr.mxu0 0.0
      %1301 = vmatpush1.msra.mxu0 0.0
      %1302 = vmatprep.subr.mxu0 0.0
      %1303 = vmatpush1.msra.mxu0 0.0
      %1304 = vmatprep.subr.mxu0 0.0
      %1305 = vmatpush1.msra.mxu0 0.0
      %1306 = vmatprep.subr.mxu0 0.0
      %1307 = vmatpush1.msra.mxu0 0.0
      %1308 = vmatprep.subr.mxu0 0.0
      %1309 = vmatpush1.msra.mxu0 0.0
      %1310 = vmatprep.subr.mxu0 0.0
      %1311 = vmatpush1.msra.mxu0 0.0
      %1312 = vmatprep.subr.mxu0 0.0
      %1313 = vmatpush1.msra.mxu0 0.0
      %1314 = vmatprep.subr.mxu0 0.0
      %1315 = vmatpush1.msra.mxu0 0.0
      %1316 = vmatprep.subr.mxu0 0.0
      %1317 = vmatpush1.msra.mxu0 0.0
      %1318 = vmatprep.subr.mxu0 0.0
      %1319 = vmatpush1.msra.mxu0 0.0
      %1320 = vmatprep.subr.mxu0 0.0
      %1321 = vmatpush1.msra.mxu0 0.0
      %1322 = vmatprep.subr.mxu0 0.0
      %1323 = vmatpush1.msra.mxu0 0.0
      %1324 = vmatprep.subr.mxu0 0.0
      %1325 = vmatpush1.msra.mxu0 0.0
      %1326 = vmatprep.subr.mxu0 0.0
      %1327 = vmatpush1.msra.mxu0 0.0
      %1328 = vmatprep.subr.mxu0 0.0
      %1329 = vmatpush1.msra.mxu0 0.0
      %1330 = vmatprep.subr.mxu0 0.0
      %1331 = vmatpush1.msra.mxu0 0.0
      %1332 = vmatprep.subr.mxu0 0.0
      %1333 = vmatpush1.msra.mxu0 0.0
      %1334 = vmatprep.mubr.f32.mxu0 0.0
      %1335 = vmatmul.mubr.f32.gmra.mrb[0].mxu0 %v1268
      %v1336 = vpop.f32.mrb[0].mxu0
      %v1337 = vadd.f32 0.0, %v1336
      %v1338 = vpop.f32.mrb[0].mxu0
      %1339 = vdwg.mxu0
      %v1340 = vadd.f32 %v1185, %v1337
      %v1341 = vld [vmem:[%s7] sm:$0x1]
      %v1343 = vlaneseq
      %v1344 = vshrl.u32 %v1343, 7
      %v1345 = vsub.s32 0, %v1344
      %v1346 = vrot.slane %v1341, %v1345
      %v1348 = vadd.f32 %v1340, %v1346
      %v1349 = vmax.f32 %v1348, 0.0
      %1350 = vst [vmem:[%s303] sm:$0xff] %v1349
      %p1351 = scmp.lt.s32.totalorder %s19, 1
      %s1352 = scalar_select %p1351, %s19, 1
      %s1353 = smul.addr %s1352, 8
      %s1354 = scalar_lea.vmem %s8, %s1353
      // Predicated region
      $region53: #{basic_block_forward.1} parent=51 // pred_check
        %p1355 = pneg %p210
      $region54: #{basic_block_forward.1} parent=51 // pred_check_branch
        %1357 = sbr.rel (%p1355) target = $region56
      $region55: #{basic_block_forward.1} parent=51 // pred_region
        _
      $region56: #{basic_block_forward.1} parent=51 // pred_fallthru
        _
    $region52: #{basic_block_forward.1} parent=5 // pred_fallthru
      _
    %p1358 = scmp.le.s32.totalorder 2, %s14
    // Predicated region
    $region57: #{basic_block_forward.1} parent=5 // pred_check
      %p1359 = pneg %p1358
    $region58: #{basic_block_forward.1} parent=5 // pred_check_branch
      %1361 = sbr.rel (%p1359) target = $region60
    $region59: #{basic_block_forward.1} parent=5 // pred_region
      %s1362 = ssub.s32 %s14, 2
      // Predicated region
      $region61: #{basic_block_forward.1} parent=59 // pred_check
        %p1363 = pneg %p216
      $region62: #{basic_block_forward.1} parent=59 // pred_check_branch
        %1365 = sbr.rel (%p1363) target = $region64
      $region63: #{basic_block_forward.1} parent=59 // pred_region
        %p1366 = scmp.lt.s32.totalorder %s20, 1
        %s1367 = scalar_select %p1366, %s20, 1
        %s1368 = smul.addr %s1367, 8
        %s1369 = scalar_lea.vmem %s8, %s1368
      $region64: #{basic_block_forward.1} parent=59 // pred_fallthru
        _
    $region60: #{basic_block_forward.1} parent=5 // pred_fallthru
      _
  $region6: #{basic_block_forward.1} parent=0 // loop_footer
    %s18 = sadd.s32 1, %s14
  $region7: #{basic_block_forward.1} parent=0 // loop_footer_branch
    %13 = sbr.rel target = $region3
  $region8: #{basic_block_forward.1} parent=0 // loop_exit
    _

</llo_original>
